<compile_context>
chip_gen: v7x
topology: tpu7x:2x2x1
jax: 0.10.0
libtpu: 0.0.40
codegen_flags: <defaults>
</compile_context>

<pallas_src>
import functools

import jax
import jax.numpy as jnp
from jax.experimental import pallas as pl
from jax.experimental.pallas import tpu as pltpu


def _pad128(n):
    return ((n + 127) // 128) * 128


def _round_up(n, m):
    return ((n + m - 1) // m) * m


# --------------------------------------------------------------------------
# Kernel
# --------------------------------------------------------------------------
def _upsd_hyper_kernel(n_layers, n_cmd, s_pad, inp_ref, eW_ref, *rest):
    """rest = (Wcat_0, ..., Wcat_{L-1}, out_ref)."""
    out_ref = rest[-1]
    wcat_refs = rest[:-1]

    inp = inp_ref[...]                               # (bb, s_pad + 128) f32
    state_blk = inp[:, :s_pad]                       # [state, 1, 0...]
    cmd_blk = inp[:, s_pad:s_pad + 128]              # [cmd,   1, 0...] (lane-aligned)

    # Embed: bias folded into eW via the ones lane of state_blk; bf16 MXU, f32 acc.
    x = jnp.tanh(jnp.dot(state_blk.astype(jnp.bfloat16), eW_ref[...],
                         preferred_element_type=jnp.float32))    # (bb, p0) f32

    for i in range(n_layers):                        # static & tiny -> unrolled
        # Build the K-augmented LHS (all f32 VPU work, v5e-safe), then one matmul.
        parts = [cmd_blk[:, d:d + 1] * x for d in range(n_cmd)]  # hyper-W generators
        parts.append(x)                              # hyper-W generator bias block
        parts.append(cmd_blk)                        # hyper-bias generator block
        z = jnp.concatenate(parts, axis=1)           # (bb, (n_cmd+1)*pi + 128)
        acc = jnp.dot(z.astype(jnp.bfloat16), wcat_refs[i][...],
                      preferred_element_type=jnp.float32)        # (bb, po) f32
        x = jnp.maximum(acc, 0.0)                    # ReLU (also on last layer)

    out_ref[...] = x.astype(out_ref.dtype)


# --------------------------------------------------------------------------
# Parameters
# --------------------------------------------------------------------------
def init_params(key, state_size, desires_size, action_size, hidden_sizes):
    """PyTorch-layout params with nn.Linear default init (U(+-1/sqrt(fan_in)))."""
    hidden = list(hidden_sizes) + [action_size]
    n_layers = len(hidden) - 1

    def linear(k, fan_in, fan_out):
        kw, kb = jax.random.split(k)
        bound = 1.0 / float(fan_in) ** 0.5
        W = jax.random.uniform(kw, (fan_out, fan_in), jnp.float32, -bound, bound)
        b = jax.random.uniform(kb, (fan_out,), jnp.float32, -bound, bound)
        return W, b

    keys = jax.random.split(key, 1 + 2 * n_layers)
    embed_W, embed_b = linear(keys[0], state_size, hidden[0])
    hyper = []
    for i in range(n_layers):
        w_W, w_b = linear(keys[1 + 2 * i], desires_size, hidden[i] * hidden[i + 1])
        b_W, b_b = linear(keys[2 + 2 * i], desires_size, hidden[i + 1])
        hyper.append(dict(w_W=w_W, w_b=w_b, b_W=b_W, b_b=b_b))
    return dict(embed_W=embed_W, embed_b=embed_b, hyper=hyper)


def pack_params(raw, state_size, desires_size, action_size, hidden_sizes):
    """One-time repacking: transpose, fold biases, lane-pad to 128, cast to bf16.

    Wcat_i layout (rows = K of the per-layer matmul, cols = padded h_out):
      [ d*pi + j , k ]        = w_W[j*h_out + k, d]      (d < D)   command-dim d
      [ D*pi + j , k ]        = w_b[j*h_out + k]                   hyper-W bias
      [ (D+1)*pi + d , k ]    = b_W[k, d]                 (d < D)  hyper-bias gen
      [ (D+1)*pi + D , k ]    = b_b[k]                             hyper-bias bias
      all other rows/cols     = 0
    """
    hidden = list(hidden_sizes) + [action_size]
    n_layers = len(hidden) - 1
    D = desires_size
    hp = [_pad128(h) for h in hidden]
    s_pad = _pad128(state_size + 1)

    # Embed weight with bias folded in (ones lane appended to state block).
    eW = jnp.zeros((s_pad, hp[0]), jnp.float32)
    eW = eW.at[:state_size, :hidden[0]].set(raw["embed_W"].T)
    eW = eW.at[state_size, :hidden[0]].set(raw["embed_b"])
    eW = eW.astype(jnp.bfloat16)

    wcats = []
    for i in range(n_layers):
        h_in, h_out = hidden[i], hidden[i + 1]
        pi, po = hp[i], hp[i + 1]
        lyr = raw["hyper"][i]
        K = (D + 1) * pi + 128
        W = jnp.zeros((K, po), jnp.float32)
        HW = lyr["w_W"].T.reshape(D, h_in, h_out)          # (D, h_in, h_out)
        for d in range(D):
            W = W.at[d * pi:d * pi + h_in, :h_out].set(HW[d])
        W = W.at[D * pi:D * pi + h_in, :h_out].set(lyr["w_b"].reshape(h_in, h_out))
        bstart = (D + 1) * pi
        W = W.at[bstart:bstart + D, :h_out].set(lyr["b_W"].T)
        W = W.at[bstart + D, :h_out].set(lyr["b_b"])
        wcats.append(W.astype(jnp.bfloat16))

    return dict(eW=eW, wcats=wcats, hidden=hidden, hp=hp, D=D, s_pad=s_pad,
                state_size=state_size, action_size=action_size)


# --------------------------------------------------------------------------
# Forward wrapper
# --------------------------------------------------------------------------
def _weight_spec(shape, single_buffer):
    kwargs = {}
    if single_buffer and hasattr(pl, "Buffered"):
        kwargs["pipeline_mode"] = pl.Buffered(1)   # constant block: no double-buffer
    try:
        return pl.BlockSpec(shape, lambda i: (0, 0), **kwargs)
    except TypeError:                              # older API without pipeline_mode
        return pl.BlockSpec(shape, lambda i: (0, 0))


def upsd_hyper_forward(state, command, packed):
    """Forward pass: one pallas_call, batch-parallel grid, padded batch tiles."""
    if isinstance(command, (list, tuple)):
        command = command[0] if len(command) == 1 else jnp.concatenate(command, axis=1)

    B = state.shape[0]
    S = packed["state_size"]
    D = packed["D"]
    s_pad = packed["s_pad"]
    hp = packed["hp"]
    n_layers = len(hp) - 1
    in_width = s_pad + 128
    p_out = hp[-1]

    # Batch-tile policy: pad B up to a big tile instead of hunting tiny divisors.
    # B > 256 always gives >= 2 grid steps (both v7x TensorCores engaged).
    if B <= 256:
        bb = _round_up(max(B, 8), 8)
    elif B >= 4096:
        bb = 512                       # v5e/v6e (128 MiB VMEM) amortize further
    else:
        bb = 256
    n_steps = _round_up(B, bb) // bb
    B_pad = n_steps * bb

    # Fused, lane-dense input slab: [state, 1, 0.. | cmd, 1, 0..]
    inp = jnp.zeros((B_pad, in_width), jnp.float32)
    inp = inp.at[:B, :S].set(state.astype(jnp.float32))
    inp = inp.at[:B, S].set(1.0)
    inp = inp.at[:B, s_pad:s_pad + D].set(command.astype(jnp.float32))
    inp = inp.at[:B, s_pad + D].set(1.0)

    kernel = functools.partial(_upsd_hyper_kernel, n_layers, D, s_pad)

    weight_shapes = [(s_pad, hp[0])] + [
        ((D + 1) * hp[i] + 128, hp[i + 1]) for i in range(n_layers)]
    weight_bytes = sum(a * b for a, b in weight_shapes) * 2           # bf16
    io_bytes = (bb * in_width + bb * p_out) * 4
    vmem_limit = int(min(64 << 20,
                         max(16 << 20, 2 * weight_bytes + 4 * io_bytes + (4 << 20))))

    def run(single_buffer_weights):
        in_specs = [pl.BlockSpec((bb, in_width), lambda i: (i, 0))]   # batched input
        for shp in weight_shapes:
            in_specs.append(_weight_spec(shp, single_buffer_weights))
        return pl.pallas_call(
            kernel,
            out_shape=jax.ShapeDtypeStruct((B_pad, p_out), jnp.float32),
            grid=(n_steps,),
            in_specs=in_specs,
            out_specs=pl.BlockSpec((bb, p_out), lambda i: (i, 0)),
            compiler_params=pltpu.CompilerParams(
                dimension_semantics=("parallel",),
                vmem_limit_bytes=vmem_limit),
        )(inp, packed["eW"], *packed["wcats"])

    try:
        out_padded = run(True)
    except Exception:                  # fallback if Buffered(1) is not supported
        out_padded = run(False)

    return out_padded[:B, :packed["action_size"]]


# --------------------------------------------------------------------------
# References (for correctness checking)
# --------------------------------------------------------------------------
def reference_forward(state, command, raw, action_size, hidden_sizes):
    """Pure-JAX f32 mirror of the PyTorch module."""
    if isinstance(command, (list, tuple)):
        command = command[0] if len(command) == 1 else jnp.concatenate(command, axis=1)
    hidden = list(hidden_sizes) + [action_size]
    B = state.shape[0]
    hi = jax.lax.Precision.HIGHEST

    x = jnp.tanh(jnp.dot(state, raw["embed_W"].T, precision=hi) + raw["embed_b"])
    for i in range(len(hidden) - 1):
        lyr = raw["hyper"][i]
        w = (jnp.dot(command, lyr["w_W"].T, precision=hi) + lyr["w_b"]
             ).reshape(B, hidden[i], hidden[i + 1])
        b = jnp.dot(command, lyr["b_W"].T, precision=hi) + lyr["b_b"]
        x = jnp.maximum(jnp.einsum("bj,bjk->bk", x, w, precision=hi) + b, 0.0)
    return x


def packed_reference(state, command, packed):
    """Plain-JAX mirror of the kernel's exact numerics (bf16 operands, f32 accum)."""
    if isinstance(command, (list, tuple)):
        command = command[0] if len(command) == 1 else jnp.concatenate(command, axis=1)
    B = state.shape[0]
    S, D, s_pad = packed["state_size"], packed["D"], packed["s_pad"]
    n_layers = len(packed["hp"]) - 1

    state_blk = jnp.zeros((B, s_pad), jnp.float32)
    state_blk = state_blk.at[:, :S].set(state.astype(jnp.float32))
    state_blk = state_blk.at[:, S].set(1.0)
    cmd_blk = jnp.zeros((B, 128), jnp.float32)
    cmd_blk = cmd_blk.at[:, :D].set(command.astype(jnp.float32))
    cmd_blk = cmd_blk.at[:, D].set(1.0)

    x = jnp.tanh(jnp.dot(state_blk.astype(jnp.bfloat16), packed["eW"],
                         preferred_element_type=jnp.float32))
    for i in range(n_layers):
        parts = [cmd_blk[:, d:d + 1] * x for d in range(D)] + [x, cmd_blk]
        z = jnp.concatenate(parts, axis=1)
        x = jnp.maximum(jnp.dot(z.astype(jnp.bfloat16), packed["wcats"][i],
                                preferred_element_type=jnp.float32), 0.0)
    return x[:, :packed["action_size"]]


# --------------------------------------------------------------------------
if __name__ == "__main__":
    key = jax.random.PRNGKey(0)
    k_param, k_state, k_cmd = jax.random.split(key, 3)

    state_size = 16
    desires_size = 2
    action_size = 4
    hidden_sizes = [32, 32]
    batch = 8

    raw = init_params(k_param, state_size, desires_size, action_size, hidden_sizes)
    packed = pack_params(raw, state_size, desires_size, action_size, hidden_sizes)

    state = jax.random.normal(k_state, (batch, state_size), jnp.float32)
    # command is a list in the PyTorch API; len==1 unwraps to a single tensor.
    command = [jax.random.normal(k_cmd, (batch, desires_size), jnp.float32)]

    out = jax.block_until_ready(upsd_hyper_forward(state, command, packed))
    assert out.shape == (batch, action_size)

    # Exact-numerics check: same bf16 operands / f32 accumulation as the kernel.
    ref_packed = packed_reference(state, command, packed)
    assert jnp.allclose(out, ref_packed, atol=5e-3, rtol=5e-3), \
        float(jnp.max(jnp.abs(out - ref_packed)))

    # Semantics check vs the full-f32 PyTorch mirror (bf16 weights -> loose tol).
    ref = reference_forward(state, command, raw, action_size, hidden_sizes)
    rel = float(jnp.linalg.norm(out - ref) / (jnp.linalg.norm(ref) + 1e-6))
    assert rel < 0.1, rel

    print("KERNEL_OK")
</pallas_src>

<mosaic_0001>
module attributes {stable_mosaic.version = 11 : i64} {
  func.func @_upsd_hyper_kernel(%arg0: i32, %arg1: memref<8x256xf32, #tpu.memory_space<vmem>>, %arg2: memref<128x128xbf16, #tpu.memory_space<vmem>>, %arg3: memref<512x128xbf16, #tpu.memory_space<vmem>>, %arg4: memref<512x128xbf16, #tpu.memory_space<vmem>>, %arg5: memref<8x128xf32, #tpu.memory_space<vmem>>) attributes {dimension_semantics = [#tpu.dimension_semantics<parallel>], iteration_bounds = array<i64: 1>, scalar_prefetch = 0 : i64, scratch_operands = 0 : i64, tpu.core_type = #tpu.core_type<tc>, window_params = [{transform_indices = @transform_0, window_bounds = array<i64: 8, 256>}, {pipeline_mode = #tpu.pipeline_mode<synchronous>, transform_indices = @transform_1, window_bounds = array<i64: 128, 128>}, {pipeline_mode = #tpu.pipeline_mode<synchronous>, transform_indices = @transform_2, window_bounds = array<i64: 512, 128>}, {pipeline_mode = #tpu.pipeline_mode<synchronous>, transform_indices = @transform_3, window_bounds = array<i64: 512, 128>}, {transform_indices = @transform_4, window_bounds = array<i64: 8, 128>}]} {
    %c0 = arith.constant 0 : index
    %c0_0 = arith.constant 0 : index
    %0 = vector.load %arg1[%c0, %c0_0] : memref<8x256xf32, #tpu.memory_space<vmem>>, vector<8x256xf32>
    %1 = vector.extract_strided_slice %0 {offsets = [0, 0], sizes = [8, 128], strides = [1, 1]} : vector<8x256xf32> to vector<8x128xf32>
    %2 = vector.extract_strided_slice %0 {offsets = [0, 128], sizes = [8, 128], strides = [1, 1]} : vector<8x256xf32> to vector<8x128xf32>
    %3 = arith.truncf %1 : vector<8x128xf32> to vector<8x128xbf16>
    %c0_1 = arith.constant 0 : index
    %c0_2 = arith.constant 0 : index
    %4 = vector.load %arg2[%c0_1, %c0_2] : memref<128x128xbf16, #tpu.memory_space<vmem>>, vector<128x128xbf16>
    %cst = arith.constant dense<0.000000e+00> : vector<8x128xf32>
    %5 = tpu.matmul %3, %4, %cst {dimension_numbers = #tpu.dot_dimension_numbers<[1], [0], [0], [1], [0, 0, 1, 1], [], []>} : vector<8x128xbf16>, vector<128x128xbf16>, vector<8x128xf32> -> vector<8x128xf32>
    %6 = math.tanh %5 : vector<8x128xf32>
    %7 = vector.extract_strided_slice %2 {offsets = [0, 0], sizes = [8, 1], strides = [1, 1]} : vector<8x128xf32> to vector<8x1xf32>
    %8 = vector.broadcast %7 : vector<8x1xf32> to vector<8x128xf32>
    %9 = arith.mulf %8, %6 : vector<8x128xf32>
    %10 = vector.extract_strided_slice %2 {offsets = [0, 1], sizes = [8, 1], strides = [1, 1]} : vector<8x128xf32> to vector<8x1xf32>
    %11 = vector.broadcast %10 : vector<8x1xf32> to vector<8x128xf32>
    %12 = arith.mulf %11, %6 : vector<8x128xf32>
    %13 = tpu.concatenate %9, %12, %6, %2 in 1 : vector<8x128xf32>, vector<8x128xf32>, vector<8x128xf32>, vector<8x128xf32> -> vector<8x512xf32>
    %14 = arith.truncf %13 : vector<8x512xf32> to vector<8x512xbf16>
    %c0_3 = arith.constant 0 : index
    %c0_4 = arith.constant 0 : index
    %15 = vector.load %arg3[%c0_3, %c0_4] : memref<512x128xbf16, #tpu.memory_space<vmem>>, vector<512x128xbf16>
    %cst_5 = arith.constant dense<0.000000e+00> : vector<8x128xf32>
    %16 = tpu.matmul %14, %15, %cst_5 {dimension_numbers = #tpu.dot_dimension_numbers<[1], [0], [0], [1], [0, 0, 1, 1], [], []>} : vector<8x512xbf16>, vector<512x128xbf16>, vector<8x128xf32> -> vector<8x128xf32>
    %cst_6 = arith.constant 0.000000e+00 : f32
    %17 = vector.broadcast %cst_6 : f32 to vector<8x128xf32>
    %18 = arith.maximumf %16, %17 : vector<8x128xf32>
    %19 = vector.extract_strided_slice %2 {offsets = [0, 0], sizes = [8, 1], strides = [1, 1]} : vector<8x128xf32> to vector<8x1xf32>
    %20 = vector.broadcast %19 : vector<8x1xf32> to vector<8x128xf32>
    %21 = arith.mulf %20, %18 : vector<8x128xf32>
    %22 = vector.extract_strided_slice %2 {offsets = [0, 1], sizes = [8, 1], strides = [1, 1]} : vector<8x128xf32> to vector<8x1xf32>
    %23 = vector.broadcast %22 : vector<8x1xf32> to vector<8x128xf32>
    %24 = arith.mulf %23, %18 : vector<8x128xf32>
    %25 = tpu.concatenate %21, %24, %18, %2 in 1 : vector<8x128xf32>, vector<8x128xf32>, vector<8x128xf32>, vector<8x128xf32> -> vector<8x512xf32>
    %26 = arith.truncf %25 : vector<8x512xf32> to vector<8x512xbf16>
    %c0_7 = arith.constant 0 : index
    %c0_8 = arith.constant 0 : index
    %27 = vector.load %arg4[%c0_7, %c0_8] : memref<512x128xbf16, #tpu.memory_space<vmem>>, vector<512x128xbf16>
    %cst_9 = arith.constant dense<0.000000e+00> : vector<8x128xf32>
    %28 = tpu.matmul %26, %27, %cst_9 {dimension_numbers = #tpu.dot_dimension_numbers<[1], [0], [0], [1], [0, 0, 1, 1], [], []>} : vector<8x512xbf16>, vector<512x128xbf16>, vector<8x128xf32> -> vector<8x128xf32>
    %cst_10 = arith.constant 0.000000e+00 : f32
    %29 = vector.broadcast %cst_10 : f32 to vector<8x128xf32>
    %30 = arith.maximumf %28, %29 : vector<8x128xf32>
    %c0_11 = arith.constant 0 : index
    %c0_12 = arith.constant 0 : index
    %31 = vector.load %arg5[%c0_11, %c0_12] : memref<8x128xf32, #tpu.memory_space<vmem>>, vector<8x128xf32>
    tpu.vector_store %arg5[%c0_11, %c0_12], %30 {strides = array<i32>} : memref<8x128xf32, #tpu.memory_space<vmem>>, vector<8x128xf32>,
    return
  }
  func.func @transform_0(%arg0: i32) -> (i32, i32) {
    %c0_i32 = arith.constant 0 : i32
    %c0_i32_0 = arith.constant 0 : i32
    return %arg0, %c0_i32 : i32, i32
  }
  func.func @transform_1(%arg0: i32) -> (i32, i32) {
    %c0_i32 = arith.constant 0 : i32
    %c0_i32_0 = arith.constant 0 : i32
    %c0_i32_1 = arith.constant 0 : i32
    return %c0_i32, %c0_i32_0 : i32, i32
  }
  func.func @transform_2(%arg0: i32) -> (i32, i32) {
    %c0_i32 = arith.constant 0 : i32
    %c0_i32_0 = arith.constant 0 : i32
    %c0_i32_1 = arith.constant 0 : i32
    return %c0_i32, %c0_i32_0 : i32, i32
  }
  func.func @transform_3(%arg0: i32) -> (i32, i32) {
    %c0_i32 = arith.constant 0 : i32
    %c0_i32_0 = arith.constant 0 : i32
    %c0_i32_1 = arith.constant 0 : i32
    return %c0_i32, %c0_i32_0 : i32, i32
  }
  func.func @transform_4(%arg0: i32) -> (i32, i32) {
    %c0_i32 = arith.constant 0 : i32
    %c0_i32_0 = arith.constant 0 : i32
    return %arg0, %c0_i32 : i32, i32
  }
}

module attributes {stable_mosaic.version = 11 : i64} {
  func.func @_upsd_hyper_kernel(%arg0: i32, %arg1: memref<8x256xf32, #tpu.memory_space<vmem>>, %arg2: memref<128x128xbf16, #tpu.memory_space<vmem>>, %arg3: memref<512x128xbf16, #tpu.memory_space<vmem>>, %arg4: memref<512x128xbf16, #tpu.memory_space<vmem>>, %arg5: memref<8x128xf32, #tpu.memory_space<vmem>>) attributes {dimension_semantics = [#tpu.dimension_semantics<parallel>], iteration_bounds = array<i64: 1>, scalar_prefetch = 0 : i64, scratch_operands = 0 : i64, tpu.core_type = #tpu.core_type<tc>, window_params = [{transform_indices = @transform_0, window_bounds = array<i64: 8, 256>}, {pipeline_mode = #tpu.pipeline_mode<synchronous>, transform_indices = @transform_1, window_bounds = array<i64: 128, 128>}, {pipeline_mode = #tpu.pipeline_mode<synchronous>, transform_indices = @transform_2, window_bounds = array<i64: 512, 128>}, {pipeline_mode = #tpu.pipeline_mode<synchronous>, transform_indices = @transform_3, window_bounds = array<i64: 512, 128>}, {transform_indices = @transform_4, window_bounds = array<i64: 8, 128>}]} {
    %c0 = arith.constant 0 : index
    %c0_0 = arith.constant 0 : index
    %0 = vector.load %arg1[%c0, %c0_0] : memref<8x256xf32, #tpu.memory_space<vmem>>, vector<8x256xf32>
    %1 = vector.extract_strided_slice %0 {offsets = [0, 0], sizes = [8, 128], strides = [1, 1]} : vector<8x256xf32> to vector<8x128xf32>
    %2 = vector.extract_strided_slice %0 {offsets = [0, 128], sizes = [8, 128], strides = [1, 1]} : vector<8x256xf32> to vector<8x128xf32>
    %3 = arith.truncf %1 : vector<8x128xf32> to vector<8x128xbf16>
    %c0_1 = arith.constant 0 : index
    %c0_2 = arith.constant 0 : index
    %4 = vector.load %arg2[%c0_1, %c0_2] : memref<128x128xbf16, #tpu.memory_space<vmem>>, vector<128x128xbf16>
    %cst = arith.constant dense<0.000000e+00> : vector<8x128xf32>
    %5 = tpu.matmul %3, %4, %cst {dimension_numbers = #tpu.dot_dimension_numbers<[1], [0], [0], [1], [0, 0, 1, 1], [], []>} : vector<8x128xbf16>, vector<128x128xbf16>, vector<8x128xf32> -> vector<8x128xf32>
    %6 = math.tanh %5 : vector<8x128xf32>
    %7 = vector.extract_strided_slice %2 {offsets = [0, 0], sizes = [8, 1], strides = [1, 1]} : vector<8x128xf32> to vector<8x1xf32>
    %8 = vector.broadcast %7 : vector<8x1xf32> to vector<8x128xf32>
    %9 = arith.mulf %8, %6 : vector<8x128xf32>
    %10 = vector.extract_strided_slice %2 {offsets = [0, 1], sizes = [8, 1], strides = [1, 1]} : vector<8x128xf32> to vector<8x1xf32>
    %11 = vector.broadcast %10 : vector<8x1xf32> to vector<8x128xf32>
    %12 = arith.mulf %11, %6 : vector<8x128xf32>
    %13 = tpu.concatenate %9, %12, %6, %2 in 1 : vector<8x128xf32>, vector<8x128xf32>, vector<8x128xf32>, vector<8x128xf32> -> vector<8x512xf32>
    %14 = arith.truncf %13 : vector<8x512xf32> to vector<8x512xbf16>
    %c0_3 = arith.constant 0 : index
    %c0_4 = arith.constant 0 : index
    %15 = vector.load %arg3[%c0_3, %c0_4] : memref<512x128xbf16, #tpu.memory_space<vmem>>, vector<512x128xbf16>
    %cst_5 = arith.constant dense<0.000000e+00> : vector<8x128xf32>
    %16 = tpu.matmul %14, %15, %cst_5 {dimension_numbers = #tpu.dot_dimension_numbers<[1], [0], [0], [1], [0, 0, 1, 1], [], []>} : vector<8x512xbf16>, vector<512x128xbf16>, vector<8x128xf32> -> vector<8x128xf32>
    %cst_6 = arith.constant 0.000000e+00 : f32
    %17 = vector.broadcast %cst_6 : f32 to vector<8x128xf32>
    %18 = arith.maximumf %16, %17 : vector<8x128xf32>
    %19 = vector.extract_strided_slice %2 {offsets = [0, 0], sizes = [8, 1], strides = [1, 1]} : vector<8x128xf32> to vector<8x1xf32>
    %20 = vector.broadcast %19 : vector<8x1xf32> to vector<8x128xf32>
    %21 = arith.mulf %20, %18 : vector<8x128xf32>
    %22 = vector.extract_strided_slice %2 {offsets = [0, 1], sizes = [8, 1], strides = [1, 1]} : vector<8x128xf32> to vector<8x1xf32>
    %23 = vector.broadcast %22 : vector<8x1xf32> to vector<8x128xf32>
    %24 = arith.mulf %23, %18 : vector<8x128xf32>
    %25 = tpu.concatenate %21, %24, %18, %2 in 1 : vector<8x128xf32>, vector<8x128xf32>, vector<8x128xf32>, vector<8x128xf32> -> vector<8x512xf32>
    %26 = arith.truncf %25 : vector<8x512xf32> to vector<8x512xbf16>
    %c0_7 = arith.constant 0 : index
    %c0_8 = arith.constant 0 : index
    %27 = vector.load %arg4[%c0_7, %c0_8] : memref<512x128xbf16, #tpu.memory_space<vmem>>, vector<512x128xbf16>
    %cst_9 = arith.constant dense<0.000000e+00> : vector<8x128xf32>
    %28 = tpu.matmul %26, %27, %cst_9 {dimension_numbers = #tpu.dot_dimension_numbers<[1], [0], [0], [1], [0, 0, 1, 1], [], []>} : vector<8x512xbf16>, vector<512x128xbf16>, vector<8x128xf32> -> vector<8x128xf32>
    %cst_10 = arith.constant 0.000000e+00 : f32
    %29 = vector.broadcast %cst_10 : f32 to vector<8x128xf32>
    %30 = arith.maximumf %28, %29 : vector<8x128xf32>
    %c0_11 = arith.constant 0 : index
    %c0_12 = arith.constant 0 : index
    %31 = vector.load %arg5[%c0_11, %c0_12] : memref<8x128xf32, #tpu.memory_space<vmem>>, vector<8x128xf32>
    tpu.vector_store %arg5[%c0_11, %c0_12], %30 {strides = array<i32>} : memref<8x128xf32, #tpu.memory_space<vmem>>, vector<8x128xf32>,
    return
  }
  func.func @transform_0(%arg0: i32) -> (i32, i32) {
    %c0_i32 = arith.constant 0 : i32
    %c0_i32_0 = arith.constant 0 : i32
    return %arg0, %c0_i32 : i32, i32
  }
  func.func @transform_1(%arg0: i32) -> (i32, i32) {
    %c0_i32 = arith.constant 0 : i32
    %c0_i32_0 = arith.constant 0 : i32
    %c0_i32_1 = arith.constant 0 : i32
    return %c0_i32, %c0_i32_0 : i32, i32
  }
  func.func @transform_2(%arg0: i32) -> (i32, i32) {
    %c0_i32 = arith.constant 0 : i32
    %c0_i32_0 = arith.constant 0 : i32
    %c0_i32_1 = arith.constant 0 : i32
    return %c0_i32, %c0_i32_0 : i32, i32
  }
  func.func @transform_3(%arg0: i32) -> (i32, i32) {
    %c0_i32 = arith.constant 0 : i32
    %c0_i32_0 = arith.constant 0 : i32
    %c0_i32_1 = arith.constant 0 : i32
    return %c0_i32, %c0_i32_0 : i32, i32
  }
  func.func @transform_4(%arg0: i32) -> (i32, i32) {
    %c0_i32 = arith.constant 0 : i32
    %c0_i32_0 = arith.constant 0 : i32
    return %arg0, %c0_i32 : i32, i32
  }
}

</mosaic_0001>

<llo_original>
// kernel: tpu_custom_call.1
$region0: #{tpu_custom_call.1}
  #allocation0 [shape = 'u32[]', space=smem, size = 0x4, offset = 0x4, fixed_abs, tag = 'smem constant byte address 0x4 - core index']
  #allocation1 [shape = 'u32[144,128]{1,0:T(1,128)}', space=vmem, size = 0x12000, scoped, tag = 'internal scratch']
  %s0 = inlined_call_operand.hbm [shape: f32[8,256], index: 0, kind: input, shape index: {}]
  %s1 = inlined_call_operand.hbm [shape: bf16[128,128], index: 1, kind: input, shape index: {}]
  %s2 = inlined_call_operand.hbm [shape: bf16[512,128], index: 2, kind: input, shape index: {}]
  %s3 = inlined_call_operand.hbm [shape: bf16[512,128], index: 3, kind: input, shape index: {}]
  %s4 = inlined_call_operand.hbm [shape: f32[8,128], index: 4, kind: output, shape index: {}]
  %s5 = sld [smem:[#allocation0]]
  $region42: #{tpu_custom_call.1} parent=0
    _
  %s7 = ssub.s32 1, %s5
  %s8 = scalar_select 0, %s7, %s5
  $region1: #{tpu_custom_call.1} parent=0
    #allocation2 [shape = 'u8[8192]{0}', space=vmem, size = 0x2000, scoped, tag = 'input window, operand 0, single buffered']
    #allocation3 [shape = 's32[1]{0}', space=sflag, size = 0x4, scoped, tag = 'scoped memory for tpu_custom_call.1']
    #allocation4 [shape = 's32[1]{0}', space=sflag, size = 0x4, scoped, tag = 'scoped memory for tpu_custom_call.1']
    #allocation5 [shape = 'u8[32768]{0}', space=vmem, size = 0x8000, scoped, tag = 'input window, operand 1, single buffered']
    #allocation6 [shape = 's32[1]{0}', space=sflag, size = 0x4, scoped, tag = 'scoped memory for tpu_custom_call.1']
    #allocation7 [shape = 'u8[131072]{0}', space=vmem, size = 0x20000, scoped, tag = 'input window, operand 2, single buffered']
    #allocation8 [shape = 'u8[131072]{0}', space=vmem, size = 0x20000, scoped, tag = 'input window, operand 3, single buffered']
    #allocation9 [shape = 's32[1]{0}', space=sflag, size = 0x4, scoped, tag = 'scoped memory for tpu_custom_call.1']
    #allocation10 [shape = 'u8[4096]{0}', space=vmem, size = 0x1000, scoped, tag = 'output window, operand 0, single buffered']
    %9 = vsyncpa [#allocation3], 0
    %10 = vsyncpa [#allocation6], 0
    %11 = vsyncpa [#allocation9], 0
    %12 = vsyncpa [#allocation4], 0
    // Predicated region
    $region2: #{tpu_custom_call.1} parent=1 // pred_check
      _
    $region3: #{tpu_custom_call.1} parent=1 // pred_check_branch
      %14 = sbr.rel (0) target = $region5
    $region4: #{tpu_custom_call.1} parent=1 // pred_region
      %s16 = ssub.s32 256, 256
      %17 = vsyncadd [#allocation3], %s16
      %s19 = sshll.u32 [#allocation2], 4
      %s20 = int_to_ptr.vmem [resolvable:$true] %s19
      %22 = dma.hbm_to_vmem [thread:$0]  %s0, 256, %s20, [#allocation3]
    $region5: #{tpu_custom_call.1} parent=1 // pred_fallthru
      _
    // Predicated region
    $region6: #{tpu_custom_call.1} parent=1 // pred_check
      _
    $region7: #{tpu_custom_call.1} parent=1 // pred_check_branch
      %24 = sbr.rel (0) target = $region9
    $region8: #{tpu_custom_call.1} parent=1 // pred_region
      %s26 = ssub.s32 1024, 1024
      %27 = vsyncadd [#allocation6], %s26
      %s28 = sshll.u32 [#allocation5], 4
      %s29 = int_to_ptr.vmem [resolvable:$true] %s28
      %34 = dma.hbm_to_vmem [thread:$0]  %s1, 1024, %s29, [#allocation6], 64, 64, 4
    $region9: #{tpu_custom_call.1} parent=1 // pred_fallthru
      _
    // Predicated region
    $region10: #{tpu_custom_call.1} parent=1 // pred_check
      _
    $region11: #{tpu_custom_call.1} parent=1 // pred_check_branch
      %36 = sbr.rel (0) target = $region13
    $region12: #{tpu_custom_call.1} parent=1 // pred_region
      %s38 = ssub.s32 4096, 4096
      %39 = vsyncadd [#allocation6], %s38
      %s40 = sshll.u32 [#allocation7], 4
      %s41 = int_to_ptr.vmem [resolvable:$true] %s40
      %46 = dma.hbm_to_vmem [thread:$0]  %s2, 4096, %s41, [#allocation6], 64, 64, 4
    $region13: #{tpu_custom_call.1} parent=1 // pred_fallthru
      _
    // Predicated region
    $region14: #{tpu_custom_call.1} parent=1 // pred_check
      _
    $region15: #{tpu_custom_call.1} parent=1 // pred_check_branch
      %48 = sbr.rel (0) target = $region17
    $region16: #{tpu_custom_call.1} parent=1 // pred_region
      %s50 = ssub.s32 4096, 4096
      %51 = vsyncadd [#allocation9], %s50
      %s52 = sshll.u32 [#allocation8], 4
      %s53 = int_to_ptr.vmem [resolvable:$true] %s52
      %58 = dma.hbm_to_vmem [thread:$0]  %s3, 4096, %s53, [#allocation9], 64, 64, 4
    $region17: #{tpu_custom_call.1} parent=1 // pred_fallthru
      _
    // Predicated region
    $region18: #{tpu_custom_call.1} parent=1 // pred_check
      _
    $region19: #{tpu_custom_call.1} parent=1 // pred_check_branch
      %60 = sbr.rel (0) target = $region21
    $region20: #{tpu_custom_call.1} parent=1 // pred_region
      %61 = dma.done [#allocation3], 256
    $region21: #{tpu_custom_call.1} parent=1 // pred_fallthru
      _
    // Predicated region
    $region22: #{tpu_custom_call.1} parent=1 // pred_check
      _
    $region23: #{tpu_custom_call.1} parent=1 // pred_check_branch
      %63 = sbr.rel (0) target = $region25
    $region24: #{tpu_custom_call.1} parent=1 // pred_region
      %64 = dma.done [#allocation6], 1024
    $region25: #{tpu_custom_call.1} parent=1 // pred_fallthru
      _
    // Predicated region
    $region26: #{tpu_custom_call.1} parent=1 // pred_check
      _
    $region27: #{tpu_custom_call.1} parent=1 // pred_check_branch
      %66 = sbr.rel (0) target = $region29
    $region28: #{tpu_custom_call.1} parent=1 // pred_region
      %67 = dma.done [#allocation6], 4096
    $region29: #{tpu_custom_call.1} parent=1 // pred_fallthru
      _
    // Predicated region
    $region30: #{tpu_custom_call.1} parent=1 // pred_check
      _
    $region31: #{tpu_custom_call.1} parent=1 // pred_check_branch
      %69 = sbr.rel (0) target = $region33
    $region32: #{tpu_custom_call.1} parent=1 // pred_region
      %70 = dma.done [#allocation9], 4096
    $region33: #{tpu_custom_call.1} parent=1 // pred_fallthru
      _
    %v72 = vld [vmem:[#allocation2] sm:$0xff]
    %v73 = vld [vmem:[#allocation2 + $0x8] sm:$0xff]
    %v74 = vpack.c.bf16 %v72, %v72
    %v75 = vld [vmem:[#allocation5] sm:$0xf]
    %v76 = vld [vmem:[#allocation5 + $0x4] sm:$0xf]
    %v77 = vld [vmem:[#allocation5 + $0x8] sm:$0xf]
    %v78 = vld [vmem:[#allocation5 + $0xc] sm:$0xf]
    %v79 = vld [vmem:[#allocation5 + $0x10] sm:$0xf]
    %v80 = vld [vmem:[#allocation5 + $0x14] sm:$0xf]
    %v81 = vld [vmem:[#allocation5 + $0x18] sm:$0xf]
    %v82 = vld [vmem:[#allocation5 + $0x1c] sm:$0xf]
    %v83 = vld [vmem:[#allocation5 + $0x20] sm:$0xf]
    %v84 = vld [vmem:[#allocation5 + $0x24] sm:$0xf]
    %v85 = vld [vmem:[#allocation5 + $0x28] sm:$0xf]
    %v86 = vld [vmem:[#allocation5 + $0x2c] sm:$0xf]
    %v87 = vld [vmem:[#allocation5 + $0x30] sm:$0xf]
    %v88 = vld [vmem:[#allocation5 + $0x34] sm:$0xf]
    %v89 = vld [vmem:[#allocation5 + $0x38] sm:$0xf]
    %v90 = vld [vmem:[#allocation5 + $0x3c] sm:$0xf]
    %v107 = vunpack.c.l.b16 %v75
    %v108 = vunpack.c.l.b16 %v76
    %v109 = vunpack.c.l.b16 %v77
    %v110 = vunpack.c.l.b16 %v78
    %v111 = vunpack.c.l.b16 %v79
    %v112 = vunpack.c.l.b16 %v80
    %v113 = vunpack.c.l.b16 %v81
    %v114 = vunpack.c.l.b16 %v82
    %v115 = vunpack.c.l.b16 %v83
    %v116 = vunpack.c.l.b16 %v84
    %v117 = vunpack.c.l.b16 %v85
    %v118 = vunpack.c.l.b16 %v86
    %v119 = vunpack.c.l.b16 %v87
    %v120 = vunpack.c.l.b16 %v88
    %v121 = vunpack.c.l.b16 %v89
    %v122 = vunpack.c.l.b16 %v90
    %v123 = vpack.c.b16 %v108, %v107
    %v124 = vpack.c.b16 %v110, %v109
    %v125 = vpack.c.b16 %v112, %v111
    %v126 = vpack.c.b16 %v114, %v113
    %v127 = vpack.c.b16 %v116, %v115
    %v128 = vpack.c.b16 %v118, %v117
    %v129 = vpack.c.b16 %v120, %v119
    %v130 = vpack.c.b16 %v122, %v121
    %139 = vmatprep.subr.bf16.mxu0 0
    %140 = vmatpush1.bf16.msra.mxu0 %v123
    %141 = vmatprep.subr.bf16.mxu0 0
    %142 = vmatpush1.bf16.msra.mxu0 %v124
    %143 = vmatprep.subr.bf16.mxu0 0
    %144 = vmatpush1.bf16.msra.mxu0 %v125
    %145 = vmatprep.subr.bf16.mxu0 0
    %146 = vmatpush1.bf16.msra.mxu0 %v126
    %147 = vmatprep.subr.bf16.mxu0 0
    %148 = vmatpush1.bf16.msra.mxu0 %v127
    %149 = vmatprep.subr.bf16.mxu0 0
    %150 = vmatpush1.bf16.msra.mxu0 %v128
    %151 = vmatprep.subr.bf16.mxu0 0
    %152 = vmatpush1.bf16.msra.mxu0 %v129
    %153 = vmatprep.subr.bf16.mxu0 0
    %154 = vmatpush1.bf16.msra.mxu0 %v130
    %155 = vmatprep.subr.bf16.mxu0 0
    %156 = vmatpush1.bf16.msra.mxu0 0
    %157 = vmatprep.subr.bf16.mxu0 0
    %158 = vmatpush1.bf16.msra.mxu0 0
    %159 = vmatprep.subr.bf16.mxu0 0
    %160 = vmatpush1.bf16.msra.mxu0 0
    %161 = vmatprep.subr.bf16.mxu0 0
    %162 = vmatpush1.bf16.msra.mxu0 0
    %163 = vmatprep.subr.bf16.mxu0 0
    %164 = vmatpush1.bf16.msra.mxu0 0
    %165 = vmatprep.subr.bf16.mxu0 0
    %166 = vmatpush1.bf16.msra.mxu0 0
    %167 = vmatprep.subr.bf16.mxu0 0
    %168 = vmatpush1.bf16.msra.mxu0 0
    %169 = vmatprep.subr.bf16.mxu0 0
    %170 = vmatpush1.bf16.msra.mxu0 0
    %171 = vmatprep.mubr.bf16.mxu0 0
    %172 = vmatmul.mubr.bf16.gmra.mrb[0].mxu0 %v74
    %v173 = vpop.f32.mrb[0].mxu0
    %v174 = vadd.f32 0.0, %v173
    %v175 = vpop.f32.mrb[0].mxu0
    %v176 = vpop.f32.mrb[0].mxu0
    %v177 = vpop.f32.mrb[0].mxu0
    %178 = vdwg.mxu0
    %v179 = vtanh.pop %v174
    %181 = vset.pattern.permute.xlu0 0
    %182 = vperm.xlu0 %181, %v73
    %v183 = vpop.permute.xlu0 %182
    %v185 = vmul.f32 %v183, %v179
    %186 = vset.pattern.permute.xlu0 1
    %187 = vperm.xlu0 %186, %v73
    %v188 = vpop.permute.xlu0 %187
    %v190 = vmul.f32 %v188, %v179
    %v191 = vpack.c.bf16 %v185, %v185
    %v192 = vpack.c.bf16 %v190, %v190
    %v193 = vpack.c.bf16 %v179, %v179
    %v194 = vpack.c.bf16 %v73, %v73
    %v195 = vld [vmem:[#allocation7] sm:$0xf]
    %v196 = vld [vmem:[#allocation7 + $0x4] sm:$0xf]
    %v197 = vld [vmem:[#allocation7 + $0x8] sm:$0xf]
    %v198 = vld [vmem:[#allocation7 + $0xc] sm:$0xf]
    %v199 = vld [vmem:[#allocation7 + $0x10] sm:$0xf]
    %v200 = vld [vmem:[#allocation7 + $0x14] sm:$0xf]
    %v201 = vld [vmem:[#allocation7 + $0x18] sm:$0xf]
    %v202 = vld [vmem:[#allocation7 + $0x1c] sm:$0xf]
    %v203 = vld [vmem:[#allocation7 + $0x20] sm:$0xf]
    %v204 = vld [vmem:[#allocation7 + $0x24] sm:$0xf]
    %v205 = vld [vmem:[#allocation7 + $0x28] sm:$0xf]
    %v206 = vld [vmem:[#allocation7 + $0x2c] sm:$0xf]
    %v207 = vld [vmem:[#allocation7 + $0x30] sm:$0xf]
    %v208 = vld [vmem:[#allocation7 + $0x34] sm:$0xf]
    %v209 = vld [vmem:[#allocation7 + $0x38] sm:$0xf]
    %v210 = vld [vmem:[#allocation7 + $0x3c] sm:$0xf]
    %v211 = vld [vmem:[#allocation7 + $0x40] sm:$0xf]
    %v212 = vld [vmem:[#allocation7 + $0x44] sm:$0xf]
    %v213 = vld [vmem:[#allocation7 + $0x48] sm:$0xf]
    %v214 = vld [vmem:[#allocation7 + $0x4c] sm:$0xf]
    %v215 = vld [vmem:[#allocation7 + $0x50] sm:$0xf]
    %v216 = vld [vmem:[#allocation7 + $0x54] sm:$0xf]
    %v217 = vld [vmem:[#allocation7 + $0x58] sm:$0xf]
    %v218 = vld [vmem:[#allocation7 + $0x5c] sm:$0xf]
    %v219 = vld [vmem:[#allocation7 + $0x60] sm:$0xf]
    %v220 = vld [vmem:[#allocation7 + $0x64] sm:$0xf]
    %v221 = vld [vmem:[#allocation7 + $0x68] sm:$0xf]
    %v222 = vld [vmem:[#allocation7 + $0x6c] sm:$0xf]
    %v223 = vld [vmem:[#allocation7 + $0x70] sm:$0xf]
    %v224 = vld [vmem:[#allocation7 + $0x74] sm:$0xf]
    %v225 = vld [vmem:[#allocation7 + $0x78] sm:$0xf]
    %v226 = vld [vmem:[#allocation7 + $0x7c] sm:$0xf]
    %v227 = vld [vmem:[#allocation7 + $0x80] sm:$0xf]
    %v228 = vld [vmem:[#allocation7 + $0x84] sm:$0xf]
    %v229 = vld [vmem:[#allocation7 + $0x88] sm:$0xf]
    %v230 = vld [vmem:[#allocation7 + $0x8c] sm:$0xf]
    %v231 = vld [vmem:[#allocation7 + $0x90] sm:$0xf]
    %v232 = vld [vmem:[#allocation7 + $0x94] sm:$0xf]
    %v233 = vld [vmem:[#allocation7 + $0x98] sm:$0xf]
    %v234 = vld [vmem:[#allocation7 + $0x9c] sm:$0xf]
    %v235 = vld [vmem:[#allocation7 + $0xa0] sm:$0xf]
    %v236 = vld [vmem:[#allocation7 + $0xa4] sm:$0xf]
    %v237 = vld [vmem:[#allocation7 + $0xa8] sm:$0xf]
    %v238 = vld [vmem:[#allocation7 + $0xac] sm:$0xf]
    %v239 = vld [vmem:[#allocation7 + $0xb0] sm:$0xf]
    %v240 = vld [vmem:[#allocation7 + $0xb4] sm:$0xf]
    %v241 = vld [vmem:[#allocation7 + $0xb8] sm:$0xf]
    %v242 = vld [vmem:[#allocation7 + $0xbc] sm:$0xf]
    %v243 = vld [vmem:[#allocation7 + $0xc0] sm:$0xf]
    %v244 = vld [vmem:[#allocation7 + $0xc4] sm:$0xf]
    %v245 = vld [vmem:[#allocation7 + $0xc8] sm:$0xf]
    %v246 = vld [vmem:[#allocation7 + $0xcc] sm:$0xf]
    %v247 = vld [vmem:[#allocation7 + $0xd0] sm:$0xf]
    %v248 = vld [vmem:[#allocation7 + $0xd4] sm:$0xf]
    %v249 = vld [vmem:[#allocation7 + $0xd8] sm:$0xf]
    %v250 = vld [vmem:[#allocation7 + $0xdc] sm:$0xf]
    %v251 = vld [vmem:[#allocation7 + $0xe0] sm:$0xf]
    %v252 = vld [vmem:[#allocation7 + $0xe4] sm:$0xf]
    %v253 = vld [vmem:[#allocation7 + $0xe8] sm:$0xf]
    %v254 = vld [vmem:[#allocation7 + $0xec] sm:$0xf]
    %v255 = vld [vmem:[#allocation7 + $0xf0] sm:$0xf]
    %v256 = vld [vmem:[#allocation7 + $0xf4] sm:$0xf]
    %v257 = vld [vmem:[#allocation7 + $0xf8] sm:$0xf]
    %v258 = vld [vmem:[#allocation7 + $0xfc] sm:$0xf]
    %v323 = vunpack.c.l.b16 %v195
    %v324 = vunpack.c.l.b16 %v196
    %v325 = vunpack.c.l.b16 %v197
    %v326 = vunpack.c.l.b16 %v198
    %v327 = vunpack.c.l.b16 %v199
    %v328 = vunpack.c.l.b16 %v200
    %v329 = vunpack.c.l.b16 %v201
    %v330 = vunpack.c.l.b16 %v202
    %v331 = vunpack.c.l.b16 %v203
    %v332 = vunpack.c.l.b16 %v204
    %v333 = vunpack.c.l.b16 %v205
    %v334 = vunpack.c.l.b16 %v206
    %v335 = vunpack.c.l.b16 %v207
    %v336 = vunpack.c.l.b16 %v208
    %v337 = vunpack.c.l.b16 %v209
    %v338 = vunpack.c.l.b16 %v210
    %v339 = vunpack.c.l.b16 %v211
    %v340 = vunpack.c.l.b16 %v212
    %v341 = vunpack.c.l.b16 %v213
    %v342 = vunpack.c.l.b16 %v214
    %v343 = vunpack.c.l.b16 %v215
    %v344 = vunpack.c.l.b16 %v216
    %v345 = vunpack.c.l.b16 %v217
    %v346 = vunpack.c.l.b16 %v218
    %v347 = vunpack.c.l.b16 %v219
    %v348 = vunpack.c.l.b16 %v220
    %v349 = vunpack.c.l.b16 %v221
    %v350 = vunpack.c.l.b16 %v222
    %v351 = vunpack.c.l.b16 %v223
    %v352 = vunpack.c.l.b16 %v224
    %v353 = vunpack.c.l.b16 %v225
    %v354 = vunpack.c.l.b16 %v226
    %v355 = vunpack.c.l.b16 %v227
    %v356 = vunpack.c.l.b16 %v228
    %v357 = vunpack.c.l.b16 %v229
    %v358 = vunpack.c.l.b16 %v230
    %v359 = vunpack.c.l.b16 %v231
    %v360 = vunpack.c.l.b16 %v232
    %v361 = vunpack.c.l.b16 %v233
    %v362 = vunpack.c.l.b16 %v234
    %v363 = vunpack.c.l.b16 %v235
    %v364 = vunpack.c.l.b16 %v236
    %v365 = vunpack.c.l.b16 %v237
    %v366 = vunpack.c.l.b16 %v238
    %v367 = vunpack.c.l.b16 %v239
    %v368 = vunpack.c.l.b16 %v240
    %v369 = vunpack.c.l.b16 %v241
    %v370 = vunpack.c.l.b16 %v242
    %v371 = vunpack.c.l.b16 %v243
    %v372 = vunpack.c.l.b16 %v244
    %v373 = vunpack.c.l.b16 %v245
    %v374 = vunpack.c.l.b16 %v246
    %v375 = vunpack.c.l.b16 %v247
    %v376 = vunpack.c.l.b16 %v248
    %v377 = vunpack.c.l.b16 %v249
    %v378 = vunpack.c.l.b16 %v250
    %v379 = vunpack.c.l.b16 %v251
    %v380 = vunpack.c.l.b16 %v252
    %v381 = vunpack.c.l.b16 %v253
    %v382 = vunpack.c.l.b16 %v254
    %v383 = vunpack.c.l.b16 %v255
    %v384 = vunpack.c.l.b16 %v256
    %v385 = vunpack.c.l.b16 %v257
    %v386 = vunpack.c.l.b16 %v258
    %v387 = vpack.c.b16 %v324, %v323
    %v388 = vpack.c.b16 %v326, %v325
    %v389 = vpack.c.b16 %v328, %v327
    %v390 = vpack.c.b16 %v330, %v329
    %v391 = vpack.c.b16 %v332, %v331
    %v392 = vpack.c.b16 %v334, %v333
    %v393 = vpack.c.b16 %v336, %v335
    %v394 = vpack.c.b16 %v338, %v337
    %v395 = vpack.c.b16 %v340, %v339
    %v396 = vpack.c.b16 %v342, %v341
    %v397 = vpack.c.b16 %v344, %v343
    %v398 = vpack.c.b16 %v346, %v345
    %v399 = vpack.c.b16 %v348, %v347
    %v400 = vpack.c.b16 %v350, %v349
    %v401 = vpack.c.b16 %v352, %v351
    %v402 = vpack.c.b16 %v354, %v353
    %v403 = vpack.c.b16 %v356, %v355
    %v404 = vpack.c.b16 %v358, %v357
    %v405 = vpack.c.b16 %v360, %v359
    %v406 = vpack.c.b16 %v362, %v361
    %v407 = vpack.c.b16 %v364, %v363
    %v408 = vpack.c.b16 %v366, %v365
    %v409 = vpack.c.b16 %v368, %v367
    %v410 = vpack.c.b16 %v370, %v369
    %v411 = vpack.c.b16 %v372, %v371
    %v412 = vpack.c.b16 %v374, %v373
    %v413 = vpack.c.b16 %v376, %v375
    %v414 = vpack.c.b16 %v378, %v377
    %v415 = vpack.c.b16 %v380, %v379
    %v416 = vpack.c.b16 %v382, %v381
    %v417 = vpack.c.b16 %v384, %v383
    %v418 = vpack.c.b16 %v386, %v385
    %451 = vmatprep.subr.bf16.mxu0 0
    %452 = vmatpush1.bf16.msra.mxu0 %v387
    %453 = vmatprep.subr.bf16.mxu0 0
    %454 = vmatpush1.bf16.msra.mxu0 %v388
    %455 = vmatprep.subr.bf16.mxu0 0
    %456 = vmatpush1.bf16.msra.mxu0 %v389
    %457 = vmatprep.subr.bf16.mxu0 0
    %458 = vmatpush1.bf16.msra.mxu0 %v390
    %459 = vmatprep.subr.bf16.mxu0 0
    %460 = vmatpush1.bf16.msra.mxu0 %v391
    %461 = vmatprep.subr.bf16.mxu0 0
    %462 = vmatpush1.bf16.msra.mxu0 %v392
    %463 = vmatprep.subr.bf16.mxu0 0
    %464 = vmatpush1.bf16.msra.mxu0 %v393
    %465 = vmatprep.subr.bf16.mxu0 0
    %466 = vmatpush1.bf16.msra.mxu0 %v394
    %467 = vmatprep.subr.bf16.mxu0 0
    %468 = vmatpush1.bf16.msra.mxu0 %v395
    %469 = vmatprep.subr.bf16.mxu0 0
    %470 = vmatpush1.bf16.msra.mxu0 %v396
    %471 = vmatprep.subr.bf16.mxu0 0
    %472 = vmatpush1.bf16.msra.mxu0 %v397
    %473 = vmatprep.subr.bf16.mxu0 0
    %474 = vmatpush1.bf16.msra.mxu0 %v398
    %475 = vmatprep.subr.bf16.mxu0 0
    %476 = vmatpush1.bf16.msra.mxu0 %v399
    %477 = vmatprep.subr.bf16.mxu0 0
    %478 = vmatpush1.bf16.msra.mxu0 %v400
    %479 = vmatprep.subr.bf16.mxu0 0
    %480 = vmatpush1.bf16.msra.mxu0 %v401
    %481 = vmatprep.subr.bf16.mxu0 0
    %482 = vmatpush1.bf16.msra.mxu0 %v402
    %483 = vmatprep.mubr.bf16.mxu0 %v192
    %484 = vmatmul.mubr.bf16.gmra.mrb[0].mxu0 %v191
    %v485 = vpop.f32.mrb[0].mxu0
    %v486 = vadd.f32 0.0, %v485
    %v487 = vpop.f32.mrb[0].mxu0
    %v488 = vpop.f32.mrb[0].mxu0
    %v489 = vpop.f32.mrb[0].mxu0
    %490 = vdwg.mxu0
    %491 = vmatprep.subr.bf16.mxu0 0
    %492 = vmatpush1.bf16.msra.mxu0 %v403
    %493 = vmatprep.subr.bf16.mxu0 0
    %494 = vmatpush1.bf16.msra.mxu0 %v404
    %495 = vmatprep.subr.bf16.mxu0 0
    %496 = vmatpush1.bf16.msra.mxu0 %v405
    %497 = vmatprep.subr.bf16.mxu0 0
    %498 = vmatpush1.bf16.msra.mxu0 %v406
    %499 = vmatprep.subr.bf16.mxu0 0
    %500 = vmatpush1.bf16.msra.mxu0 %v407
    %501 = vmatprep.subr.bf16.mxu0 0
    %502 = vmatpush1.bf16.msra.mxu0 %v408
    %503 = vmatprep.subr.bf16.mxu0 0
    %504 = vmatpush1.bf16.msra.mxu0 %v409
    %505 = vmatprep.subr.bf16.mxu0 0
    %506 = vmatpush1.bf16.msra.mxu0 %v410
    %507 = vmatprep.subr.bf16.mxu0 0
    %508 = vmatpush1.bf16.msra.mxu0 %v411
    %509 = vmatprep.subr.bf16.mxu0 0
    %510 = vmatpush1.bf16.msra.mxu0 %v412
    %511 = vmatprep.subr.bf16.mxu0 0
    %512 = vmatpush1.bf16.msra.mxu0 %v413
    %513 = vmatprep.subr.bf16.mxu0 0
    %514 = vmatpush1.bf16.msra.mxu0 %v414
    %515 = vmatprep.subr.bf16.mxu0 0
    %516 = vmatpush1.bf16.msra.mxu0 %v415
    %517 = vmatprep.subr.bf16.mxu0 0
    %518 = vmatpush1.bf16.msra.mxu0 %v416
    %519 = vmatprep.subr.bf16.mxu0 0
    %520 = vmatpush1.bf16.msra.mxu0 %v417
    %521 = vmatprep.subr.bf16.mxu0 0
    %522 = vmatpush1.bf16.msra.mxu0 %v418
    %523 = vmatprep.mubr.bf16.mxu0 %v194
    %524 = vmatmul.mubr.bf16.gmra.mrb[0].mxu0 %v193
    %v525 = vpop.f32.mrb[0].mxu0
    %v526 = vadd.f32 %v486, %v525
    %v527 = vpop.f32.mrb[0].mxu0
    %v528 = vpop.f32.mrb[0].mxu0
    %v529 = vpop.f32.mrb[0].mxu0
    %530 = vdwg.mxu0
    %v531 = vmax.f32 %v526, 0.0
    %v532 = vmul.f32 %v183, %v531
    %v533 = vmul.f32 %v188, %v531
    %v534 = vpack.c.bf16 %v532, %v532
    %v535 = vpack.c.bf16 %v533, %v533
    %v536 = vpack.c.bf16 %v531, %v531
    %v537 = vld [vmem:[#allocation8] sm:$0xf]
    %v538 = vld [vmem:[#allocation8 + $0x4] sm:$0xf]
    %v539 = vld [vmem:[#allocation8 + $0x8] sm:$0xf]
    %v540 = vld [vmem:[#allocation8 + $0xc] sm:$0xf]
    %v541 = vld [vmem:[#allocation8 + $0x10] sm:$0xf]
    %v542 = vld [vmem:[#allocation8 + $0x14] sm:$0xf]
    %v543 = vld [vmem:[#allocation8 + $0x18] sm:$0xf]
    %v544 = vld [vmem:[#allocation8 + $0x1c] sm:$0xf]
    %v545 = vld [vmem:[#allocation8 + $0x20] sm:$0xf]
    %v546 = vld [vmem:[#allocation8 + $0x24] sm:$0xf]
    %v547 = vld [vmem:[#allocation8 + $0x28] sm:$0xf]
    %v548 = vld [vmem:[#allocation8 + $0x2c] sm:$0xf]
    %v549 = vld [vmem:[#allocation8 + $0x30] sm:$0xf]
    %v550 = vld [vmem:[#allocation8 + $0x34] sm:$0xf]
    %v551 = vld [vmem:[#allocation8 + $0x38] sm:$0xf]
    %v552 = vld [vmem:[#allocation8 + $0x3c] sm:$0xf]
    %v553 = vld [vmem:[#allocation8 + $0x40] sm:$0xf]
    %v554 = vld [vmem:[#allocation8 + $0x44] sm:$0xf]
    %v555 = vld [vmem:[#allocation8 + $0x48] sm:$0xf]
    %v556 = vld [vmem:[#allocation8 + $0x4c] sm:$0xf]
    %v557 = vld [vmem:[#allocation8 + $0x50] sm:$0xf]
    %v558 = vld [vmem:[#allocation8 + $0x54] sm:$0xf]
    %v559 = vld [vmem:[#allocation8 + $0x58] sm:$0xf]
    %v560 = vld [vmem:[#allocation8 + $0x5c] sm:$0xf]
    %v561 = vld [vmem:[#allocation8 + $0x60] sm:$0xf]
    %v562 = vld [vmem:[#allocation8 + $0x64] sm:$0xf]
    %v563 = vld [vmem:[#allocation8 + $0x68] sm:$0xf]
    %v564 = vld [vmem:[#allocation8 + $0x6c] sm:$0xf]
    %v565 = vld [vmem:[#allocation8 + $0x70] sm:$0xf]
    %v566 = vld [vmem:[#allocation8 + $0x74] sm:$0xf]
    %v567 = vld [vmem:[#allocation8 + $0x78] sm:$0xf]
    %v568 = vld [vmem:[#allocation8 + $0x7c] sm:$0xf]
    %v569 = vld [vmem:[#allocation8 + $0x80] sm:$0xf]
    %v570 = vld [vmem:[#allocation8 + $0x84] sm:$0xf]
    %v571 = vld [vmem:[#allocation8 + $0x88] sm:$0xf]
    %v572 = vld [vmem:[#allocation8 + $0x8c] sm:$0xf]
    %v573 = vld [vmem:[#allocation8 + $0x90] sm:$0xf]
    %v574 = vld [vmem:[#allocation8 + $0x94] sm:$0xf]
    %v575 = vld [vmem:[#allocation8 + $0x98] sm:$0xf]
    %v576 = vld [vmem:[#allocation8 + $0x9c] sm:$0xf]
    %v577 = vld [vmem:[#allocation8 + $0xa0] sm:$0xf]
    %v578 = vld [vmem:[#allocation8 + $0xa4] sm:$0xf]
    %v579 = vld [vmem:[#allocation8 + $0xa8] sm:$0xf]
    %v580 = vld [vmem:[#allocation8 + $0xac] sm:$0xf]
    %v581 = vld [vmem:[#allocation8 + $0xb0] sm:$0xf]
    %v582 = vld [vmem:[#allocation8 + $0xb4] sm:$0xf]
    %v583 = vld [vmem:[#allocation8 + $0xb8] sm:$0xf]
    %v584 = vld [vmem:[#allocation8 + $0xbc] sm:$0xf]
    %v585 = vld [vmem:[#allocation8 + $0xc0] sm:$0xf]
    %v586 = vld [vmem:[#allocation8 + $0xc4] sm:$0xf]
    %v587 = vld [vmem:[#allocation8 + $0xc8] sm:$0xf]
    %v588 = vld [vmem:[#allocation8 + $0xcc] sm:$0xf]
    %v589 = vld [vmem:[#allocation8 + $0xd0] sm:$0xf]
    %v590 = vld [vmem:[#allocation8 + $0xd4] sm:$0xf]
    %v591 = vld [vmem:[#allocation8 + $0xd8] sm:$0xf]
    %v592 = vld [vmem:[#allocation8 + $0xdc] sm:$0xf]
    %v593 = vld [vmem:[#allocation8 + $0xe0] sm:$0xf]
    %v594 = vld [vmem:[#allocation8 + $0xe4] sm:$0xf]
    %v595 = vld [vmem:[#allocation8 + $0xe8] sm:$0xf]
    %v596 = vld [vmem:[#allocation8 + $0xec] sm:$0xf]
    %v597 = vld [vmem:[#allocation8 + $0xf0] sm:$0xf]
    %v598 = vld [vmem:[#allocation8 + $0xf4] sm:$0xf]
    %v599 = vld [vmem:[#allocation8 + $0xf8] sm:$0xf]
    %v600 = vld [vmem:[#allocation8 + $0xfc] sm:$0xf]
    %v665 = vunpack.c.l.b16 %v537
    %v666 = vunpack.c.l.b16 %v538
    %v667 = vunpack.c.l.b16 %v539
    %v668 = vunpack.c.l.b16 %v540
    %v669 = vunpack.c.l.b16 %v541
    %v670 = vunpack.c.l.b16 %v542
    %v671 = vunpack.c.l.b16 %v543
    %v672 = vunpack.c.l.b16 %v544
    %v673 = vunpack.c.l.b16 %v545
    %v674 = vunpack.c.l.b16 %v546
    %v675 = vunpack.c.l.b16 %v547
    %v676 = vunpack.c.l.b16 %v548
    %v677 = vunpack.c.l.b16 %v549
    %v678 = vunpack.c.l.b16 %v550
    %v679 = vunpack.c.l.b16 %v551
    %v680 = vunpack.c.l.b16 %v552
    %v681 = vunpack.c.l.b16 %v553
    %v682 = vunpack.c.l.b16 %v554
    %v683 = vunpack.c.l.b16 %v555
    %v684 = vunpack.c.l.b16 %v556
    %v685 = vunpack.c.l.b16 %v557
    %v686 = vunpack.c.l.b16 %v558
    %v687 = vunpack.c.l.b16 %v559
    %v688 = vunpack.c.l.b16 %v560
    %v689 = vunpack.c.l.b16 %v561
    %v690 = vunpack.c.l.b16 %v562
    %v691 = vunpack.c.l.b16 %v563
    %v692 = vunpack.c.l.b16 %v564
    %v693 = vunpack.c.l.b16 %v565
    %v694 = vunpack.c.l.b16 %v566
    %v695 = vunpack.c.l.b16 %v567
    %v696 = vunpack.c.l.b16 %v568
    %v697 = vunpack.c.l.b16 %v569
    %v698 = vunpack.c.l.b16 %v570
    %v699 = vunpack.c.l.b16 %v571
    %v700 = vunpack.c.l.b16 %v572
    %v701 = vunpack.c.l.b16 %v573
    %v702 = vunpack.c.l.b16 %v574
    %v703 = vunpack.c.l.b16 %v575
    %v704 = vunpack.c.l.b16 %v576
    %v705 = vunpack.c.l.b16 %v577
    %v706 = vunpack.c.l.b16 %v578
    %v707 = vunpack.c.l.b16 %v579
    %v708 = vunpack.c.l.b16 %v580
    %v709 = vunpack.c.l.b16 %v581
    %v710 = vunpack.c.l.b16 %v582
    %v711 = vunpack.c.l.b16 %v583
    %v712 = vunpack.c.l.b16 %v584
    %v713 = vunpack.c.l.b16 %v585
    %v714 = vunpack.c.l.b16 %v586
    %v715 = vunpack.c.l.b16 %v587
    %v716 = vunpack.c.l.b16 %v588
    %v717 = vunpack.c.l.b16 %v589
    %v718 = vunpack.c.l.b16 %v590
    %v719 = vunpack.c.l.b16 %v591
    %v720 = vunpack.c.l.b16 %v592
    %v721 = vunpack.c.l.b16 %v593
    %v722 = vunpack.c.l.b16 %v594
    %v723 = vunpack.c.l.b16 %v595
    %v724 = vunpack.c.l.b16 %v596
    %v725 = vunpack.c.l.b16 %v597
    %v726 = vunpack.c.l.b16 %v598
    %v727 = vunpack.c.l.b16 %v599
    %v728 = vunpack.c.l.b16 %v600
    %v729 = vpack.c.b16 %v666, %v665
    %v730 = vpack.c.b16 %v668, %v667
    %v731 = vpack.c.b16 %v670, %v669
    %v732 = vpack.c.b16 %v672, %v671
    %v733 = vpack.c.b16 %v674, %v673
    %v734 = vpack.c.b16 %v676, %v675
    %v735 = vpack.c.b16 %v678, %v677
    %v736 = vpack.c.b16 %v680, %v679
    %v737 = vpack.c.b16 %v682, %v681
    %v738 = vpack.c.b16 %v684, %v683
    %v739 = vpack.c.b16 %v686, %v685
    %v740 = vpack.c.b16 %v688, %v687
    %v741 = vpack.c.b16 %v690, %v689
    %v742 = vpack.c.b16 %v692, %v691
    %v743 = vpack.c.b16 %v694, %v693
    %v744 = vpack.c.b16 %v696, %v695
    %v745 = vpack.c.b16 %v698, %v697
    %v746 = vpack.c.b16 %v700, %v699
    %v747 = vpack.c.b16 %v702, %v701
    %v748 = vpack.c.b16 %v704, %v703
    %v749 = vpack.c.b16 %v706, %v705
    %v750 = vpack.c.b16 %v708, %v707
    %v751 = vpack.c.b16 %v710, %v709
    %v752 = vpack.c.b16 %v712, %v711
    %v753 = vpack.c.b16 %v714, %v713
    %v754 = vpack.c.b16 %v716, %v715
    %v755 = vpack.c.b16 %v718, %v717
    %v756 = vpack.c.b16 %v720, %v719
    %v757 = vpack.c.b16 %v722, %v721
    %v758 = vpack.c.b16 %v724, %v723
    %v759 = vpack.c.b16 %v726, %v725
    %v760 = vpack.c.b16 %v728, %v727
    %793 = vmatprep.subr.bf16.mxu0 0
    %794 = vmatpush1.bf16.msra.mxu0 %v729
    %795 = vmatprep.subr.bf16.mxu0 0
    %796 = vmatpush1.bf16.msra.mxu0 %v730
    %797 = vmatprep.subr.bf16.mxu0 0
    %798 = vmatpush1.bf16.msra.mxu0 %v731
    %799 = vmatprep.subr.bf16.mxu0 0
    %800 = vmatpush1.bf16.msra.mxu0 %v732
    %801 = vmatprep.subr.bf16.mxu0 0
    %802 = vmatpush1.bf16.msra.mxu0 %v733
    %803 = vmatprep.subr.bf16.mxu0 0
    %804 = vmatpush1.bf16.msra.mxu0 %v734
    %805 = vmatprep.subr.bf16.mxu0 0
    %806 = vmatpush1.bf16.msra.mxu0 %v735
    %807 = vmatprep.subr.bf16.mxu0 0
    %808 = vmatpush1.bf16.msra.mxu0 %v736
    %809 = vmatprep.subr.bf16.mxu0 0
    %810 = vmatpush1.bf16.msra.mxu0 %v737
    %811 = vmatprep.subr.bf16.mxu0 0
    %812 = vmatpush1.bf16.msra.mxu0 %v738
    %813 = vmatprep.subr.bf16.mxu0 0
    %814 = vmatpush1.bf16.msra.mxu0 %v739
    %815 = vmatprep.subr.bf16.mxu0 0
    %816 = vmatpush1.bf16.msra.mxu0 %v740
    %817 = vmatprep.subr.bf16.mxu0 0
    %818 = vmatpush1.bf16.msra.mxu0 %v741
    %819 = vmatprep.subr.bf16.mxu0 0
    %820 = vmatpush1.bf16.msra.mxu0 %v742
    %821 = vmatprep.subr.bf16.mxu0 0
    %822 = vmatpush1.bf16.msra.mxu0 %v743
    %823 = vmatprep.subr.bf16.mxu0 0
    %824 = vmatpush1.bf16.msra.mxu0 %v744
    %825 = vmatprep.mubr.bf16.mxu0 %v535
    %826 = vmatmul.mubr.bf16.gmra.mrb[0].mxu0 %v534
    %v827 = vpop.f32.mrb[0].mxu0
    %v828 = vadd.f32 0.0, %v827
    %v829 = vpop.f32.mrb[0].mxu0
    %v830 = vpop.f32.mrb[0].mxu0
    %v831 = vpop.f32.mrb[0].mxu0
    %832 = vdwg.mxu0
    %833 = vmatprep.subr.bf16.mxu0 0
    %834 = vmatpush1.bf16.msra.mxu0 %v745
    %835 = vmatprep.subr.bf16.mxu0 0
    %836 = vmatpush1.bf16.msra.mxu0 %v746
    %837 = vmatprep.subr.bf16.mxu0 0
    %838 = vmatpush1.bf16.msra.mxu0 %v747
    %839 = vmatprep.subr.bf16.mxu0 0
    %840 = vmatpush1.bf16.msra.mxu0 %v748
    %841 = vmatprep.subr.bf16.mxu0 0
    %842 = vmatpush1.bf16.msra.mxu0 %v749
    %843 = vmatprep.subr.bf16.mxu0 0
    %844 = vmatpush1.bf16.msra.mxu0 %v750
    %845 = vmatprep.subr.bf16.mxu0 0
    %846 = vmatpush1.bf16.msra.mxu0 %v751
    %847 = vmatprep.subr.bf16.mxu0 0
    %848 = vmatpush1.bf16.msra.mxu0 %v752
    %849 = vmatprep.subr.bf16.mxu0 0
    %850 = vmatpush1.bf16.msra.mxu0 %v753
    %851 = vmatprep.subr.bf16.mxu0 0
    %852 = vmatpush1.bf16.msra.mxu0 %v754
    %853 = vmatprep.subr.bf16.mxu0 0
    %854 = vmatpush1.bf16.msra.mxu0 %v755
    %855 = vmatprep.subr.bf16.mxu0 0
    %856 = vmatpush1.bf16.msra.mxu0 %v756
    %857 = vmatprep.subr.bf16.mxu0 0
    %858 = vmatpush1.bf16.msra.mxu0 %v757
    %859 = vmatprep.subr.bf16.mxu0 0
    %860 = vmatpush1.bf16.msra.mxu0 %v758
    %861 = vmatprep.subr.bf16.mxu0 0
    %862 = vmatpush1.bf16.msra.mxu0 %v759
    %863 = vmatprep.subr.bf16.mxu0 0
    %864 = vmatpush1.bf16.msra.mxu0 %v760
    %865 = vmatprep.mubr.bf16.mxu0 %v194
    %866 = vmatmul.mubr.bf16.gmra.mrb[0].mxu0 %v536
    %v867 = vpop.f32.mrb[0].mxu0
    %v868 = vadd.f32 %v828, %v867
    %v869 = vpop.f32.mrb[0].mxu0
    %v870 = vpop.f32.mrb[0].mxu0
    %v871 = vpop.f32.mrb[0].mxu0
    %872 = vdwg.mxu0
    %v873 = vmax.f32 %v868, 0.0
    %874 = vst [vmem:[#allocation10] sm:$0xff] %v873
    // Predicated region
    $region34: #{tpu_custom_call.1} parent=1 // pred_check
      _
    $region35: #{tpu_custom_call.1} parent=1 // pred_check_branch
      %876 = sbr.rel (0) target = $region37
    $region36: #{tpu_custom_call.1} parent=1 // pred_region
      %s878 = ssub.s32 128, 128
      %879 = vsyncadd [#allocation4], %s878
      %s881 = sshll.u32 [#allocation10], 4
      %s882 = int_to_ptr.vmem [resolvable:$true] %s881
      %884 = dma.vmem_to_hbm [thread:$0]  %s882, 128, %s4, [#allocation4]
    $region37: #{tpu_custom_call.1} parent=1 // pred_fallthru
      _
    // Predicated region
    $region38: #{tpu_custom_call.1} parent=1 // pred_check
      _
    $region39: #{tpu_custom_call.1} parent=1 // pred_check_branch
      %886 = sbr.rel (0) target = $region41
    $region40: #{tpu_custom_call.1} parent=1 // pred_region
      %887 = dma.done [#allocation4], 128
    $region41: #{tpu_custom_call.1} parent=1 // pred_fallthru
      _
    %888 = vsyncpa [#allocation3], 1
    %889 = vsyncpa [#allocation6], 1
    %890 = vsyncpa [#allocation9], 1
    %891 = vsyncpa [#allocation4], 1

// kernel: tpu_custom_call.1
$region0: #{tpu_custom_call.1}
  #allocation0 [shape = 'u32[]', space=smem, size = 0x4, offset = 0x4, fixed_abs, tag = 'smem constant byte address 0x4 - core index']
  #allocation1 [shape = 'u32[144,128]{1,0:T(1,128)}', space=vmem, size = 0x12000, scoped, tag = 'internal scratch']
  %s0 = inlined_call_operand.hbm [shape: f32[8,256], index: 0, kind: input, shape index: {}]
  %s1 = inlined_call_operand.hbm [shape: bf16[128,128], index: 1, kind: input, shape index: {}]
  %s2 = inlined_call_operand.hbm [shape: bf16[512,128], index: 2, kind: input, shape index: {}]
  %s3 = inlined_call_operand.hbm [shape: bf16[512,128], index: 3, kind: input, shape index: {}]
  %s4 = inlined_call_operand.hbm [shape: f32[8,128], index: 4, kind: output, shape index: {}]
  %s5 = sld [smem:[#allocation0]]
  $region42: #{tpu_custom_call.1} parent=0
    _
  %s7 = ssub.s32 1, %s5
  %s8 = scalar_select 0, %s7, %s5
  $region1: #{tpu_custom_call.1} parent=0
    #allocation2 [shape = 'u8[8192]{0}', space=vmem, size = 0x2000, scoped, tag = 'input window, operand 0, single buffered']
    #allocation3 [shape = 's32[1]{0}', space=sflag, size = 0x4, scoped, tag = 'scoped memory for tpu_custom_call.1']
    #allocation4 [shape = 's32[1]{0}', space=sflag, size = 0x4, scoped, tag = 'scoped memory for tpu_custom_call.1']
    #allocation5 [shape = 'u8[32768]{0}', space=vmem, size = 0x8000, scoped, tag = 'input window, operand 1, single buffered']
    #allocation6 [shape = 's32[1]{0}', space=sflag, size = 0x4, scoped, tag = 'scoped memory for tpu_custom_call.1']
    #allocation7 [shape = 'u8[131072]{0}', space=vmem, size = 0x20000, scoped, tag = 'input window, operand 2, single buffered']
    #allocation8 [shape = 'u8[131072]{0}', space=vmem, size = 0x20000, scoped, tag = 'input window, operand 3, single buffered']
    #allocation9 [shape = 's32[1]{0}', space=sflag, size = 0x4, scoped, tag = 'scoped memory for tpu_custom_call.1']
    #allocation10 [shape = 'u8[4096]{0}', space=vmem, size = 0x1000, scoped, tag = 'output window, operand 0, single buffered']
    %9 = vsyncpa [#allocation3], 0
    %10 = vsyncpa [#allocation6], 0
    %11 = vsyncpa [#allocation9], 0
    %12 = vsyncpa [#allocation4], 0
    // Predicated region
    $region2: #{tpu_custom_call.1} parent=1 // pred_check
      _
    $region3: #{tpu_custom_call.1} parent=1 // pred_check_branch
      %14 = sbr.rel (0) target = $region5
    $region4: #{tpu_custom_call.1} parent=1 // pred_region
      %s16 = ssub.s32 256, 256
      %17 = vsyncadd [#allocation3], %s16
      %s19 = sshll.u32 [#allocation2], 4
      %s20 = int_to_ptr.vmem [resolvable:$true] %s19
      %22 = dma.hbm_to_vmem [thread:$0]  %s0, 256, %s20, [#allocation3]
    $region5: #{tpu_custom_call.1} parent=1 // pred_fallthru
      _
    // Predicated region
    $region6: #{tpu_custom_call.1} parent=1 // pred_check
      _
    $region7: #{tpu_custom_call.1} parent=1 // pred_check_branch
      %24 = sbr.rel (0) target = $region9
    $region8: #{tpu_custom_call.1} parent=1 // pred_region
      %s26 = ssub.s32 1024, 1024
      %27 = vsyncadd [#allocation6], %s26
      %s28 = sshll.u32 [#allocation5], 4
      %s29 = int_to_ptr.vmem [resolvable:$true] %s28
      %34 = dma.hbm_to_vmem [thread:$0]  %s1, 1024, %s29, [#allocation6], 64, 64, 4
    $region9: #{tpu_custom_call.1} parent=1 // pred_fallthru
      _
    // Predicated region
    $region10: #{tpu_custom_call.1} parent=1 // pred_check
      _
    $region11: #{tpu_custom_call.1} parent=1 // pred_check_branch
      %36 = sbr.rel (0) target = $region13
    $region12: #{tpu_custom_call.1} parent=1 // pred_region
      %s38 = ssub.s32 4096, 4096
      %39 = vsyncadd [#allocation6], %s38
      %s40 = sshll.u32 [#allocation7], 4
      %s41 = int_to_ptr.vmem [resolvable:$true] %s40
      %46 = dma.hbm_to_vmem [thread:$0]  %s2, 4096, %s41, [#allocation6], 64, 64, 4
    $region13: #{tpu_custom_call.1} parent=1 // pred_fallthru
      _
    // Predicated region
    $region14: #{tpu_custom_call.1} parent=1 // pred_check
      _
    $region15: #{tpu_custom_call.1} parent=1 // pred_check_branch
      %48 = sbr.rel (0) target = $region17
    $region16: #{tpu_custom_call.1} parent=1 // pred_region
      %s50 = ssub.s32 4096, 4096
      %51 = vsyncadd [#allocation9], %s50
      %s52 = sshll.u32 [#allocation8], 4
      %s53 = int_to_ptr.vmem [resolvable:$true] %s52
      %58 = dma.hbm_to_vmem [thread:$0]  %s3, 4096, %s53, [#allocation9], 64, 64, 4
    $region17: #{tpu_custom_call.1} parent=1 // pred_fallthru
      _
    // Predicated region
    $region18: #{tpu_custom_call.1} parent=1 // pred_check
      _
    $region19: #{tpu_custom_call.1} parent=1 // pred_check_branch
      %60 = sbr.rel (0) target = $region21
    $region20: #{tpu_custom_call.1} parent=1 // pred_region
      %61 = dma.done [#allocation3], 256
    $region21: #{tpu_custom_call.1} parent=1 // pred_fallthru
      _
    // Predicated region
    $region22: #{tpu_custom_call.1} parent=1 // pred_check
      _
    $region23: #{tpu_custom_call.1} parent=1 // pred_check_branch
      %63 = sbr.rel (0) target = $region25
    $region24: #{tpu_custom_call.1} parent=1 // pred_region
      %64 = dma.done [#allocation6], 1024
    $region25: #{tpu_custom_call.1} parent=1 // pred_fallthru
      _
    // Predicated region
    $region26: #{tpu_custom_call.1} parent=1 // pred_check
      _
    $region27: #{tpu_custom_call.1} parent=1 // pred_check_branch
      %66 = sbr.rel (0) target = $region29
    $region28: #{tpu_custom_call.1} parent=1 // pred_region
      %67 = dma.done [#allocation6], 4096
    $region29: #{tpu_custom_call.1} parent=1 // pred_fallthru
      _
    // Predicated region
    $region30: #{tpu_custom_call.1} parent=1 // pred_check
      _
    $region31: #{tpu_custom_call.1} parent=1 // pred_check_branch
      %69 = sbr.rel (0) target = $region33
    $region32: #{tpu_custom_call.1} parent=1 // pred_region
      %70 = dma.done [#allocation9], 4096
    $region33: #{tpu_custom_call.1} parent=1 // pred_fallthru
      _
    %v72 = vld [vmem:[#allocation2] sm:$0xff]
    %v73 = vld [vmem:[#allocation2 + $0x8] sm:$0xff]
    %v74 = vpack.c.bf16 %v72, %v72
    %v75 = vld [vmem:[#allocation5] sm:$0xf]
    %v76 = vld [vmem:[#allocation5 + $0x4] sm:$0xf]
    %v77 = vld [vmem:[#allocation5 + $0x8] sm:$0xf]
    %v78 = vld [vmem:[#allocation5 + $0xc] sm:$0xf]
    %v79 = vld [vmem:[#allocation5 + $0x10] sm:$0xf]
    %v80 = vld [vmem:[#allocation5 + $0x14] sm:$0xf]
    %v81 = vld [vmem:[#allocation5 + $0x18] sm:$0xf]
    %v82 = vld [vmem:[#allocation5 + $0x1c] sm:$0xf]
    %v83 = vld [vmem:[#allocation5 + $0x20] sm:$0xf]
    %v84 = vld [vmem:[#allocation5 + $0x24] sm:$0xf]
    %v85 = vld [vmem:[#allocation5 + $0x28] sm:$0xf]
    %v86 = vld [vmem:[#allocation5 + $0x2c] sm:$0xf]
    %v87 = vld [vmem:[#allocation5 + $0x30] sm:$0xf]
    %v88 = vld [vmem:[#allocation5 + $0x34] sm:$0xf]
    %v89 = vld [vmem:[#allocation5 + $0x38] sm:$0xf]
    %v90 = vld [vmem:[#allocation5 + $0x3c] sm:$0xf]
    %v107 = vunpack.c.l.b16 %v75
    %v108 = vunpack.c.l.b16 %v76
    %v109 = vunpack.c.l.b16 %v77
    %v110 = vunpack.c.l.b16 %v78
    %v111 = vunpack.c.l.b16 %v79
    %v112 = vunpack.c.l.b16 %v80
    %v113 = vunpack.c.l.b16 %v81
    %v114 = vunpack.c.l.b16 %v82
    %v115 = vunpack.c.l.b16 %v83
    %v116 = vunpack.c.l.b16 %v84
    %v117 = vunpack.c.l.b16 %v85
    %v118 = vunpack.c.l.b16 %v86
    %v119 = vunpack.c.l.b16 %v87
    %v120 = vunpack.c.l.b16 %v88
    %v121 = vunpack.c.l.b16 %v89
    %v122 = vunpack.c.l.b16 %v90
    %v123 = vpack.c.b16 %v108, %v107
    %v124 = vpack.c.b16 %v110, %v109
    %v125 = vpack.c.b16 %v112, %v111
    %v126 = vpack.c.b16 %v114, %v113
    %v127 = vpack.c.b16 %v116, %v115
    %v128 = vpack.c.b16 %v118, %v117
    %v129 = vpack.c.b16 %v120, %v119
    %v130 = vpack.c.b16 %v122, %v121
    %139 = vmatprep.subr.bf16.mxu0 0
    %140 = vmatpush1.bf16.msra.mxu0 %v123
    %141 = vmatprep.subr.bf16.mxu0 0
    %142 = vmatpush1.bf16.msra.mxu0 %v124
    %143 = vmatprep.subr.bf16.mxu0 0
    %144 = vmatpush1.bf16.msra.mxu0 %v125
    %145 = vmatprep.subr.bf16.mxu0 0
    %146 = vmatpush1.bf16.msra.mxu0 %v126
    %147 = vmatprep.subr.bf16.mxu0 0
    %148 = vmatpush1.bf16.msra.mxu0 %v127
    %149 = vmatprep.subr.bf16.mxu0 0
    %150 = vmatpush1.bf16.msra.mxu0 %v128
    %151 = vmatprep.subr.bf16.mxu0 0
    %152 = vmatpush1.bf16.msra.mxu0 %v129
    %153 = vmatprep.subr.bf16.mxu0 0
    %154 = vmatpush1.bf16.msra.mxu0 %v130
    %155 = vmatprep.subr.bf16.mxu0 0
    %156 = vmatpush1.bf16.msra.mxu0 0
    %157 = vmatprep.subr.bf16.mxu0 0
    %158 = vmatpush1.bf16.msra.mxu0 0
    %159 = vmatprep.subr.bf16.mxu0 0
    %160 = vmatpush1.bf16.msra.mxu0 0
    %161 = vmatprep.subr.bf16.mxu0 0
    %162 = vmatpush1.bf16.msra.mxu0 0
    %163 = vmatprep.subr.bf16.mxu0 0
    %164 = vmatpush1.bf16.msra.mxu0 0
    %165 = vmatprep.subr.bf16.mxu0 0
    %166 = vmatpush1.bf16.msra.mxu0 0
    %167 = vmatprep.subr.bf16.mxu0 0
    %168 = vmatpush1.bf16.msra.mxu0 0
    %169 = vmatprep.subr.bf16.mxu0 0
    %170 = vmatpush1.bf16.msra.mxu0 0
    %171 = vmatprep.mubr.bf16.mxu0 0
    %172 = vmatmul.mubr.bf16.gmra.mrb[0].mxu0 %v74
    %v173 = vpop.f32.mrb[0].mxu0
    %v174 = vadd.f32 0.0, %v173
    %v175 = vpop.f32.mrb[0].mxu0
    %v176 = vpop.f32.mrb[0].mxu0
    %v177 = vpop.f32.mrb[0].mxu0
    %178 = vdwg.mxu0
    %v179 = vtanh.pop %v174
    %181 = vset.pattern.permute.xlu0 0
    %182 = vperm.xlu0 %181, %v73
    %v183 = vpop.permute.xlu0 %182
    %v185 = vmul.f32 %v183, %v179
    %186 = vset.pattern.permute.xlu0 1
    %187 = vperm.xlu0 %186, %v73
    %v188 = vpop.permute.xlu0 %187
    %v190 = vmul.f32 %v188, %v179
    %v191 = vpack.c.bf16 %v185, %v185
    %v192 = vpack.c.bf16 %v190, %v190
    %v193 = vpack.c.bf16 %v179, %v179
    %v194 = vpack.c.bf16 %v73, %v73
    %v195 = vld [vmem:[#allocation7] sm:$0xf]
    %v196 = vld [vmem:[#allocation7 + $0x4] sm:$0xf]
    %v197 = vld [vmem:[#allocation7 + $0x8] sm:$0xf]
    %v198 = vld [vmem:[#allocation7 + $0xc] sm:$0xf]
    %v199 = vld [vmem:[#allocation7 + $0x10] sm:$0xf]
    %v200 = vld [vmem:[#allocation7 + $0x14] sm:$0xf]
    %v201 = vld [vmem:[#allocation7 + $0x18] sm:$0xf]
    %v202 = vld [vmem:[#allocation7 + $0x1c] sm:$0xf]
    %v203 = vld [vmem:[#allocation7 + $0x20] sm:$0xf]
    %v204 = vld [vmem:[#allocation7 + $0x24] sm:$0xf]
    %v205 = vld [vmem:[#allocation7 + $0x28] sm:$0xf]
    %v206 = vld [vmem:[#allocation7 + $0x2c] sm:$0xf]
    %v207 = vld [vmem:[#allocation7 + $0x30] sm:$0xf]
    %v208 = vld [vmem:[#allocation7 + $0x34] sm:$0xf]
    %v209 = vld [vmem:[#allocation7 + $0x38] sm:$0xf]
    %v210 = vld [vmem:[#allocation7 + $0x3c] sm:$0xf]
    %v211 = vld [vmem:[#allocation7 + $0x40] sm:$0xf]
    %v212 = vld [vmem:[#allocation7 + $0x44] sm:$0xf]
    %v213 = vld [vmem:[#allocation7 + $0x48] sm:$0xf]
    %v214 = vld [vmem:[#allocation7 + $0x4c] sm:$0xf]
    %v215 = vld [vmem:[#allocation7 + $0x50] sm:$0xf]
    %v216 = vld [vmem:[#allocation7 + $0x54] sm:$0xf]
    %v217 = vld [vmem:[#allocation7 + $0x58] sm:$0xf]
    %v218 = vld [vmem:[#allocation7 + $0x5c] sm:$0xf]
    %v219 = vld [vmem:[#allocation7 + $0x60] sm:$0xf]
    %v220 = vld [vmem:[#allocation7 + $0x64] sm:$0xf]
    %v221 = vld [vmem:[#allocation7 + $0x68] sm:$0xf]
    %v222 = vld [vmem:[#allocation7 + $0x6c] sm:$0xf]
    %v223 = vld [vmem:[#allocation7 + $0x70] sm:$0xf]
    %v224 = vld [vmem:[#allocation7 + $0x74] sm:$0xf]
    %v225 = vld [vmem:[#allocation7 + $0x78] sm:$0xf]
    %v226 = vld [vmem:[#allocation7 + $0x7c] sm:$0xf]
    %v227 = vld [vmem:[#allocation7 + $0x80] sm:$0xf]
    %v228 = vld [vmem:[#allocation7 + $0x84] sm:$0xf]
    %v229 = vld [vmem:[#allocation7 + $0x88] sm:$0xf]
    %v230 = vld [vmem:[#allocation7 + $0x8c] sm:$0xf]
    %v231 = vld [vmem:[#allocation7 + $0x90] sm:$0xf]
    %v232 = vld [vmem:[#allocation7 + $0x94] sm:$0xf]
    %v233 = vld [vmem:[#allocation7 + $0x98] sm:$0xf]
    %v234 = vld [vmem:[#allocation7 + $0x9c] sm:$0xf]
    %v235 = vld [vmem:[#allocation7 + $0xa0] sm:$0xf]
    %v236 = vld [vmem:[#allocation7 + $0xa4] sm:$0xf]
    %v237 = vld [vmem:[#allocation7 + $0xa8] sm:$0xf]
    %v238 = vld [vmem:[#allocation7 + $0xac] sm:$0xf]
    %v239 = vld [vmem:[#allocation7 + $0xb0] sm:$0xf]
    %v240 = vld [vmem:[#allocation7 + $0xb4] sm:$0xf]
    %v241 = vld [vmem:[#allocation7 + $0xb8] sm:$0xf]
    %v242 = vld [vmem:[#allocation7 + $0xbc] sm:$0xf]
    %v243 = vld [vmem:[#allocation7 + $0xc0] sm:$0xf]
    %v244 = vld [vmem:[#allocation7 + $0xc4] sm:$0xf]
    %v245 = vld [vmem:[#allocation7 + $0xc8] sm:$0xf]
    %v246 = vld [vmem:[#allocation7 + $0xcc] sm:$0xf]
    %v247 = vld [vmem:[#allocation7 + $0xd0] sm:$0xf]
    %v248 = vld [vmem:[#allocation7 + $0xd4] sm:$0xf]
    %v249 = vld [vmem:[#allocation7 + $0xd8] sm:$0xf]
    %v250 = vld [vmem:[#allocation7 + $0xdc] sm:$0xf]
    %v251 = vld [vmem:[#allocation7 + $0xe0] sm:$0xf]
    %v252 = vld [vmem:[#allocation7 + $0xe4] sm:$0xf]
    %v253 = vld [vmem:[#allocation7 + $0xe8] sm:$0xf]
    %v254 = vld [vmem:[#allocation7 + $0xec] sm:$0xf]
    %v255 = vld [vmem:[#allocation7 + $0xf0] sm:$0xf]
    %v256 = vld [vmem:[#allocation7 + $0xf4] sm:$0xf]
    %v257 = vld [vmem:[#allocation7 + $0xf8] sm:$0xf]
    %v258 = vld [vmem:[#allocation7 + $0xfc] sm:$0xf]
    %v323 = vunpack.c.l.b16 %v195
    %v324 = vunpack.c.l.b16 %v196
    %v325 = vunpack.c.l.b16 %v197
    %v326 = vunpack.c.l.b16 %v198
    %v327 = vunpack.c.l.b16 %v199
    %v328 = vunpack.c.l.b16 %v200
    %v329 = vunpack.c.l.b16 %v201
    %v330 = vunpack.c.l.b16 %v202
    %v331 = vunpack.c.l.b16 %v203
    %v332 = vunpack.c.l.b16 %v204
    %v333 = vunpack.c.l.b16 %v205
    %v334 = vunpack.c.l.b16 %v206
    %v335 = vunpack.c.l.b16 %v207
    %v336 = vunpack.c.l.b16 %v208
    %v337 = vunpack.c.l.b16 %v209
    %v338 = vunpack.c.l.b16 %v210
    %v339 = vunpack.c.l.b16 %v211
    %v340 = vunpack.c.l.b16 %v212
    %v341 = vunpack.c.l.b16 %v213
    %v342 = vunpack.c.l.b16 %v214
    %v343 = vunpack.c.l.b16 %v215
    %v344 = vunpack.c.l.b16 %v216
    %v345 = vunpack.c.l.b16 %v217
    %v346 = vunpack.c.l.b16 %v218
    %v347 = vunpack.c.l.b16 %v219
    %v348 = vunpack.c.l.b16 %v220
    %v349 = vunpack.c.l.b16 %v221
    %v350 = vunpack.c.l.b16 %v222
    %v351 = vunpack.c.l.b16 %v223
    %v352 = vunpack.c.l.b16 %v224
    %v353 = vunpack.c.l.b16 %v225
    %v354 = vunpack.c.l.b16 %v226
    %v355 = vunpack.c.l.b16 %v227
    %v356 = vunpack.c.l.b16 %v228
    %v357 = vunpack.c.l.b16 %v229
    %v358 = vunpack.c.l.b16 %v230
    %v359 = vunpack.c.l.b16 %v231
    %v360 = vunpack.c.l.b16 %v232
    %v361 = vunpack.c.l.b16 %v233
    %v362 = vunpack.c.l.b16 %v234
    %v363 = vunpack.c.l.b16 %v235
    %v364 = vunpack.c.l.b16 %v236
    %v365 = vunpack.c.l.b16 %v237
    %v366 = vunpack.c.l.b16 %v238
    %v367 = vunpack.c.l.b16 %v239
    %v368 = vunpack.c.l.b16 %v240
    %v369 = vunpack.c.l.b16 %v241
    %v370 = vunpack.c.l.b16 %v242
    %v371 = vunpack.c.l.b16 %v243
    %v372 = vunpack.c.l.b16 %v244
    %v373 = vunpack.c.l.b16 %v245
    %v374 = vunpack.c.l.b16 %v246
    %v375 = vunpack.c.l.b16 %v247
    %v376 = vunpack.c.l.b16 %v248
    %v377 = vunpack.c.l.b16 %v249
    %v378 = vunpack.c.l.b16 %v250
    %v379 = vunpack.c.l.b16 %v251
    %v380 = vunpack.c.l.b16 %v252
    %v381 = vunpack.c.l.b16 %v253
    %v382 = vunpack.c.l.b16 %v254
    %v383 = vunpack.c.l.b16 %v255
    %v384 = vunpack.c.l.b16 %v256
    %v385 = vunpack.c.l.b16 %v257
    %v386 = vunpack.c.l.b16 %v258
    %v387 = vpack.c.b16 %v324, %v323
    %v388 = vpack.c.b16 %v326, %v325
    %v389 = vpack.c.b16 %v328, %v327
    %v390 = vpack.c.b16 %v330, %v329
    %v391 = vpack.c.b16 %v332, %v331
    %v392 = vpack.c.b16 %v334, %v333
    %v393 = vpack.c.b16 %v336, %v335
    %v394 = vpack.c.b16 %v338, %v337
    %v395 = vpack.c.b16 %v340, %v339
    %v396 = vpack.c.b16 %v342, %v341
    %v397 = vpack.c.b16 %v344, %v343
    %v398 = vpack.c.b16 %v346, %v345
    %v399 = vpack.c.b16 %v348, %v347
    %v400 = vpack.c.b16 %v350, %v349
    %v401 = vpack.c.b16 %v352, %v351
    %v402 = vpack.c.b16 %v354, %v353
    %v403 = vpack.c.b16 %v356, %v355
    %v404 = vpack.c.b16 %v358, %v357
    %v405 = vpack.c.b16 %v360, %v359
    %v406 = vpack.c.b16 %v362, %v361
    %v407 = vpack.c.b16 %v364, %v363
    %v408 = vpack.c.b16 %v366, %v365
    %v409 = vpack.c.b16 %v368, %v367
    %v410 = vpack.c.b16 %v370, %v369
    %v411 = vpack.c.b16 %v372, %v371
    %v412 = vpack.c.b16 %v374, %v373
    %v413 = vpack.c.b16 %v376, %v375
    %v414 = vpack.c.b16 %v378, %v377
    %v415 = vpack.c.b16 %v380, %v379
    %v416 = vpack.c.b16 %v382, %v381
    %v417 = vpack.c.b16 %v384, %v383
    %v418 = vpack.c.b16 %v386, %v385
    %451 = vmatprep.subr.bf16.mxu0 0
    %452 = vmatpush1.bf16.msra.mxu0 %v387
    %453 = vmatprep.subr.bf16.mxu0 0
    %454 = vmatpush1.bf16.msra.mxu0 %v388
    %455 = vmatprep.subr.bf16.mxu0 0
    %456 = vmatpush1.bf16.msra.mxu0 %v389
    %457 = vmatprep.subr.bf16.mxu0 0
    %458 = vmatpush1.bf16.msra.mxu0 %v390
    %459 = vmatprep.subr.bf16.mxu0 0
    %460 = vmatpush1.bf16.msra.mxu0 %v391
    %461 = vmatprep.subr.bf16.mxu0 0
    %462 = vmatpush1.bf16.msra.mxu0 %v392
    %463 = vmatprep.subr.bf16.mxu0 0
    %464 = vmatpush1.bf16.msra.mxu0 %v393
    %465 = vmatprep.subr.bf16.mxu0 0
    %466 = vmatpush1.bf16.msra.mxu0 %v394
    %467 = vmatprep.subr.bf16.mxu0 0
    %468 = vmatpush1.bf16.msra.mxu0 %v395
    %469 = vmatprep.subr.bf16.mxu0 0
    %470 = vmatpush1.bf16.msra.mxu0 %v396
    %471 = vmatprep.subr.bf16.mxu0 0
    %472 = vmatpush1.bf16.msra.mxu0 %v397
    %473 = vmatprep.subr.bf16.mxu0 0
    %474 = vmatpush1.bf16.msra.mxu0 %v398
    %475 = vmatprep.subr.bf16.mxu0 0
    %476 = vmatpush1.bf16.msra.mxu0 %v399
    %477 = vmatprep.subr.bf16.mxu0 0
    %478 = vmatpush1.bf16.msra.mxu0 %v400
    %479 = vmatprep.subr.bf16.mxu0 0
    %480 = vmatpush1.bf16.msra.mxu0 %v401
    %481 = vmatprep.subr.bf16.mxu0 0
    %482 = vmatpush1.bf16.msra.mxu0 %v402
    %483 = vmatprep.mubr.bf16.mxu0 %v192
    %484 = vmatmul.mubr.bf16.gmra.mrb[0].mxu0 %v191
    %v485 = vpop.f32.mrb[0].mxu0
    %v486 = vadd.f32 0.0, %v485
    %v487 = vpop.f32.mrb[0].mxu0
    %v488 = vpop.f32.mrb[0].mxu0
    %v489 = vpop.f32.mrb[0].mxu0
    %490 = vdwg.mxu0
    %491 = vmatprep.subr.bf16.mxu0 0
    %492 = vmatpush1.bf16.msra.mxu0 %v403
    %493 = vmatprep.subr.bf16.mxu0 0
    %494 = vmatpush1.bf16.msra.mxu0 %v404
    %495 = vmatprep.subr.bf16.mxu0 0
    %496 = vmatpush1.bf16.msra.mxu0 %v405
    %497 = vmatprep.subr.bf16.mxu0 0
    %498 = vmatpush1.bf16.msra.mxu0 %v406
    %499 = vmatprep.subr.bf16.mxu0 0
    %500 = vmatpush1.bf16.msra.mxu0 %v407
    %501 = vmatprep.subr.bf16.mxu0 0
    %502 = vmatpush1.bf16.msra.mxu0 %v408
    %503 = vmatprep.subr.bf16.mxu0 0
    %504 = vmatpush1.bf16.msra.mxu0 %v409
    %505 = vmatprep.subr.bf16.mxu0 0
    %506 = vmatpush1.bf16.msra.mxu0 %v410
    %507 = vmatprep.subr.bf16.mxu0 0
    %508 = vmatpush1.bf16.msra.mxu0 %v411
    %509 = vmatprep.subr.bf16.mxu0 0
    %510 = vmatpush1.bf16.msra.mxu0 %v412
    %511 = vmatprep.subr.bf16.mxu0 0
    %512 = vmatpush1.bf16.msra.mxu0 %v413
    %513 = vmatprep.subr.bf16.mxu0 0
    %514 = vmatpush1.bf16.msra.mxu0 %v414
    %515 = vmatprep.subr.bf16.mxu0 0
    %516 = vmatpush1.bf16.msra.mxu0 %v415
    %517 = vmatprep.subr.bf16.mxu0 0
    %518 = vmatpush1.bf16.msra.mxu0 %v416
    %519 = vmatprep.subr.bf16.mxu0 0
    %520 = vmatpush1.bf16.msra.mxu0 %v417
    %521 = vmatprep.subr.bf16.mxu0 0
    %522 = vmatpush1.bf16.msra.mxu0 %v418
    %523 = vmatprep.mubr.bf16.mxu0 %v194
    %524 = vmatmul.mubr.bf16.gmra.mrb[0].mxu0 %v193
    %v525 = vpop.f32.mrb[0].mxu0
    %v526 = vadd.f32 %v486, %v525
    %v527 = vpop.f32.mrb[0].mxu0
    %v528 = vpop.f32.mrb[0].mxu0
    %v529 = vpop.f32.mrb[0].mxu0
    %530 = vdwg.mxu0
    %v531 = vmax.f32 %v526, 0.0
    %v532 = vmul.f32 %v183, %v531
    %v533 = vmul.f32 %v188, %v531
    %v534 = vpack.c.bf16 %v532, %v532
    %v535 = vpack.c.bf16 %v533, %v533
    %v536 = vpack.c.bf16 %v531, %v531
    %v537 = vld [vmem:[#allocation8] sm:$0xf]
    %v538 = vld [vmem:[#allocation8 + $0x4] sm:$0xf]
    %v539 = vld [vmem:[#allocation8 + $0x8] sm:$0xf]
    %v540 = vld [vmem:[#allocation8 + $0xc] sm:$0xf]
    %v541 = vld [vmem:[#allocation8 + $0x10] sm:$0xf]
    %v542 = vld [vmem:[#allocation8 + $0x14] sm:$0xf]
    %v543 = vld [vmem:[#allocation8 + $0x18] sm:$0xf]
    %v544 = vld [vmem:[#allocation8 + $0x1c] sm:$0xf]
    %v545 = vld [vmem:[#allocation8 + $0x20] sm:$0xf]
    %v546 = vld [vmem:[#allocation8 + $0x24] sm:$0xf]
    %v547 = vld [vmem:[#allocation8 + $0x28] sm:$0xf]
    %v548 = vld [vmem:[#allocation8 + $0x2c] sm:$0xf]
    %v549 = vld [vmem:[#allocation8 + $0x30] sm:$0xf]
    %v550 = vld [vmem:[#allocation8 + $0x34] sm:$0xf]
    %v551 = vld [vmem:[#allocation8 + $0x38] sm:$0xf]
    %v552 = vld [vmem:[#allocation8 + $0x3c] sm:$0xf]
    %v553 = vld [vmem:[#allocation8 + $0x40] sm:$0xf]
    %v554 = vld [vmem:[#allocation8 + $0x44] sm:$0xf]
    %v555 = vld [vmem:[#allocation8 + $0x48] sm:$0xf]
    %v556 = vld [vmem:[#allocation8 + $0x4c] sm:$0xf]
    %v557 = vld [vmem:[#allocation8 + $0x50] sm:$0xf]
    %v558 = vld [vmem:[#allocation8 + $0x54] sm:$0xf]
    %v559 = vld [vmem:[#allocation8 + $0x58] sm:$0xf]
    %v560 = vld [vmem:[#allocation8 + $0x5c] sm:$0xf]
    %v561 = vld [vmem:[#allocation8 + $0x60] sm:$0xf]
    %v562 = vld [vmem:[#allocation8 + $0x64] sm:$0xf]
    %v563 = vld [vmem:[#allocation8 + $0x68] sm:$0xf]
    %v564 = vld [vmem:[#allocation8 + $0x6c] sm:$0xf]
    %v565 = vld [vmem:[#allocation8 + $0x70] sm:$0xf]
    %v566 = vld [vmem:[#allocation8 + $0x74] sm:$0xf]
    %v567 = vld [vmem:[#allocation8 + $0x78] sm:$0xf]
    %v568 = vld [vmem:[#allocation8 + $0x7c] sm:$0xf]
    %v569 = vld [vmem:[#allocation8 + $0x80] sm:$0xf]
    %v570 = vld [vmem:[#allocation8 + $0x84] sm:$0xf]
    %v571 = vld [vmem:[#allocation8 + $0x88] sm:$0xf]
    %v572 = vld [vmem:[#allocation8 + $0x8c] sm:$0xf]
    %v573 = vld [vmem:[#allocation8 + $0x90] sm:$0xf]
    %v574 = vld [vmem:[#allocation8 + $0x94] sm:$0xf]
    %v575 = vld [vmem:[#allocation8 + $0x98] sm:$0xf]
    %v576 = vld [vmem:[#allocation8 + $0x9c] sm:$0xf]
    %v577 = vld [vmem:[#allocation8 + $0xa0] sm:$0xf]
    %v578 = vld [vmem:[#allocation8 + $0xa4] sm:$0xf]
    %v579 = vld [vmem:[#allocation8 + $0xa8] sm:$0xf]
    %v580 = vld [vmem:[#allocation8 + $0xac] sm:$0xf]
    %v581 = vld [vmem:[#allocation8 + $0xb0] sm:$0xf]
    %v582 = vld [vmem:[#allocation8 + $0xb4] sm:$0xf]
    %v583 = vld [vmem:[#allocation8 + $0xb8] sm:$0xf]
    %v584 = vld [vmem:[#allocation8 + $0xbc] sm:$0xf]
    %v585 = vld [vmem:[#allocation8 + $0xc0] sm:$0xf]
    %v586 = vld [vmem:[#allocation8 + $0xc4] sm:$0xf]
    %v587 = vld [vmem:[#allocation8 + $0xc8] sm:$0xf]
    %v588 = vld [vmem:[#allocation8 + $0xcc] sm:$0xf]
    %v589 = vld [vmem:[#allocation8 + $0xd0] sm:$0xf]
    %v590 = vld [vmem:[#allocation8 + $0xd4] sm:$0xf]
    %v591 = vld [vmem:[#allocation8 + $0xd8] sm:$0xf]
    %v592 = vld [vmem:[#allocation8 + $0xdc] sm:$0xf]
    %v593 = vld [vmem:[#allocation8 + $0xe0] sm:$0xf]
    %v594 = vld [vmem:[#allocation8 + $0xe4] sm:$0xf]
    %v595 = vld [vmem:[#allocation8 + $0xe8] sm:$0xf]
    %v596 = vld [vmem:[#allocation8 + $0xec] sm:$0xf]
    %v597 = vld [vmem:[#allocation8 + $0xf0] sm:$0xf]
    %v598 = vld [vmem:[#allocation8 + $0xf4] sm:$0xf]
    %v599 = vld [vmem:[#allocation8 + $0xf8] sm:$0xf]
    %v600 = vld [vmem:[#allocation8 + $0xfc] sm:$0xf]
    %v665 = vunpack.c.l.b16 %v537
    %v666 = vunpack.c.l.b16 %v538
    %v667 = vunpack.c.l.b16 %v539
    %v668 = vunpack.c.l.b16 %v540
    %v669 = vunpack.c.l.b16 %v541
    %v670 = vunpack.c.l.b16 %v542
    %v671 = vunpack.c.l.b16 %v543
    %v672 = vunpack.c.l.b16 %v544
    %v673 = vunpack.c.l.b16 %v545
    %v674 = vunpack.c.l.b16 %v546
    %v675 = vunpack.c.l.b16 %v547
    %v676 = vunpack.c.l.b16 %v548
    %v677 = vunpack.c.l.b16 %v549
    %v678 = vunpack.c.l.b16 %v550
    %v679 = vunpack.c.l.b16 %v551
    %v680 = vunpack.c.l.b16 %v552
    %v681 = vunpack.c.l.b16 %v553
    %v682 = vunpack.c.l.b16 %v554
    %v683 = vunpack.c.l.b16 %v555
    %v684 = vunpack.c.l.b16 %v556
    %v685 = vunpack.c.l.b16 %v557
    %v686 = vunpack.c.l.b16 %v558
    %v687 = vunpack.c.l.b16 %v559
    %v688 = vunpack.c.l.b16 %v560
    %v689 = vunpack.c.l.b16 %v561
    %v690 = vunpack.c.l.b16 %v562
    %v691 = vunpack.c.l.b16 %v563
    %v692 = vunpack.c.l.b16 %v564
    %v693 = vunpack.c.l.b16 %v565
    %v694 = vunpack.c.l.b16 %v566
    %v695 = vunpack.c.l.b16 %v567
    %v696 = vunpack.c.l.b16 %v568
    %v697 = vunpack.c.l.b16 %v569
    %v698 = vunpack.c.l.b16 %v570
    %v699 = vunpack.c.l.b16 %v571
    %v700 = vunpack.c.l.b16 %v572
    %v701 = vunpack.c.l.b16 %v573
    %v702 = vunpack.c.l.b16 %v574
    %v703 = vunpack.c.l.b16 %v575
    %v704 = vunpack.c.l.b16 %v576
    %v705 = vunpack.c.l.b16 %v577
    %v706 = vunpack.c.l.b16 %v578
    %v707 = vunpack.c.l.b16 %v579
    %v708 = vunpack.c.l.b16 %v580
    %v709 = vunpack.c.l.b16 %v581
    %v710 = vunpack.c.l.b16 %v582
    %v711 = vunpack.c.l.b16 %v583
    %v712 = vunpack.c.l.b16 %v584
    %v713 = vunpack.c.l.b16 %v585
    %v714 = vunpack.c.l.b16 %v586
    %v715 = vunpack.c.l.b16 %v587
    %v716 = vunpack.c.l.b16 %v588
    %v717 = vunpack.c.l.b16 %v589
    %v718 = vunpack.c.l.b16 %v590
    %v719 = vunpack.c.l.b16 %v591
    %v720 = vunpack.c.l.b16 %v592
    %v721 = vunpack.c.l.b16 %v593
    %v722 = vunpack.c.l.b16 %v594
    %v723 = vunpack.c.l.b16 %v595
    %v724 = vunpack.c.l.b16 %v596
    %v725 = vunpack.c.l.b16 %v597
    %v726 = vunpack.c.l.b16 %v598
    %v727 = vunpack.c.l.b16 %v599
    %v728 = vunpack.c.l.b16 %v600
    %v729 = vpack.c.b16 %v666, %v665
    %v730 = vpack.c.b16 %v668, %v667
    %v731 = vpack.c.b16 %v670, %v669
    %v732 = vpack.c.b16 %v672, %v671
    %v733 = vpack.c.b16 %v674, %v673
    %v734 = vpack.c.b16 %v676, %v675
    %v735 = vpack.c.b16 %v678, %v677
    %v736 = vpack.c.b16 %v680, %v679
    %v737 = vpack.c.b16 %v682, %v681
    %v738 = vpack.c.b16 %v684, %v683
    %v739 = vpack.c.b16 %v686, %v685
    %v740 = vpack.c.b16 %v688, %v687
    %v741 = vpack.c.b16 %v690, %v689
    %v742 = vpack.c.b16 %v692, %v691
    %v743 = vpack.c.b16 %v694, %v693
    %v744 = vpack.c.b16 %v696, %v695
    %v745 = vpack.c.b16 %v698, %v697
    %v746 = vpack.c.b16 %v700, %v699
    %v747 = vpack.c.b16 %v702, %v701
    %v748 = vpack.c.b16 %v704, %v703
    %v749 = vpack.c.b16 %v706, %v705
    %v750 = vpack.c.b16 %v708, %v707
    %v751 = vpack.c.b16 %v710, %v709
    %v752 = vpack.c.b16 %v712, %v711
    %v753 = vpack.c.b16 %v714, %v713
    %v754 = vpack.c.b16 %v716, %v715
    %v755 = vpack.c.b16 %v718, %v717
    %v756 = vpack.c.b16 %v720, %v719
    %v757 = vpack.c.b16 %v722, %v721
    %v758 = vpack.c.b16 %v724, %v723
    %v759 = vpack.c.b16 %v726, %v725
    %v760 = vpack.c.b16 %v728, %v727
    %793 = vmatprep.subr.bf16.mxu0 0
    %794 = vmatpush1.bf16.msra.mxu0 %v729
    %795 = vmatprep.subr.bf16.mxu0 0
    %796 = vmatpush1.bf16.msra.mxu0 %v730
    %797 = vmatprep.subr.bf16.mxu0 0
    %798 = vmatpush1.bf16.msra.mxu0 %v731
    %799 = vmatprep.subr.bf16.mxu0 0
    %800 = vmatpush1.bf16.msra.mxu0 %v732
    %801 = vmatprep.subr.bf16.mxu0 0
    %802 = vmatpush1.bf16.msra.mxu0 %v733
    %803 = vmatprep.subr.bf16.mxu0 0
    %804 = vmatpush1.bf16.msra.mxu0 %v734
    %805 = vmatprep.subr.bf16.mxu0 0
    %806 = vmatpush1.bf16.msra.mxu0 %v735
    %807 = vmatprep.subr.bf16.mxu0 0
    %808 = vmatpush1.bf16.msra.mxu0 %v736
    %809 = vmatprep.subr.bf16.mxu0 0
    %810 = vmatpush1.bf16.msra.mxu0 %v737
    %811 = vmatprep.subr.bf16.mxu0 0
    %812 = vmatpush1.bf16.msra.mxu0 %v738
    %813 = vmatprep.subr.bf16.mxu0 0
    %814 = vmatpush1.bf16.msra.mxu0 %v739
    %815 = vmatprep.subr.bf16.mxu0 0
    %816 = vmatpush1.bf16.msra.mxu0 %v740
    %817 = vmatprep.subr.bf16.mxu0 0
    %818 = vmatpush1.bf16.msra.mxu0 %v741
    %819 = vmatprep.subr.bf16.mxu0 0
    %820 = vmatpush1.bf16.msra.mxu0 %v742
    %821 = vmatprep.subr.bf16.mxu0 0
    %822 = vmatpush1.bf16.msra.mxu0 %v743
    %823 = vmatprep.subr.bf16.mxu0 0
    %824 = vmatpush1.bf16.msra.mxu0 %v744
    %825 = vmatprep.mubr.bf16.mxu0 %v535
    %826 = vmatmul.mubr.bf16.gmra.mrb[0].mxu0 %v534
    %v827 = vpop.f32.mrb[0].mxu0
    %v828 = vadd.f32 0.0, %v827
    %v829 = vpop.f32.mrb[0].mxu0
    %v830 = vpop.f32.mrb[0].mxu0
    %v831 = vpop.f32.mrb[0].mxu0
    %832 = vdwg.mxu0
    %833 = vmatprep.subr.bf16.mxu0 0
    %834 = vmatpush1.bf16.msra.mxu0 %v745
    %835 = vmatprep.subr.bf16.mxu0 0
    %836 = vmatpush1.bf16.msra.mxu0 %v746
    %837 = vmatprep.subr.bf16.mxu0 0
    %838 = vmatpush1.bf16.msra.mxu0 %v747
    %839 = vmatprep.subr.bf16.mxu0 0
    %840 = vmatpush1.bf16.msra.mxu0 %v748
    %841 = vmatprep.subr.bf16.mxu0 0
    %842 = vmatpush1.bf16.msra.mxu0 %v749
    %843 = vmatprep.subr.bf16.mxu0 0
    %844 = vmatpush1.bf16.msra.mxu0 %v750
    %845 = vmatprep.subr.bf16.mxu0 0
    %846 = vmatpush1.bf16.msra.mxu0 %v751
    %847 = vmatprep.subr.bf16.mxu0 0
    %848 = vmatpush1.bf16.msra.mxu0 %v752
    %849 = vmatprep.subr.bf16.mxu0 0
    %850 = vmatpush1.bf16.msra.mxu0 %v753
    %851 = vmatprep.subr.bf16.mxu0 0
    %852 = vmatpush1.bf16.msra.mxu0 %v754
    %853 = vmatprep.subr.bf16.mxu0 0
    %854 = vmatpush1.bf16.msra.mxu0 %v755
    %855 = vmatprep.subr.bf16.mxu0 0
    %856 = vmatpush1.bf16.msra.mxu0 %v756
    %857 = vmatprep.subr.bf16.mxu0 0
    %858 = vmatpush1.bf16.msra.mxu0 %v757
    %859 = vmatprep.subr.bf16.mxu0 0
    %860 = vmatpush1.bf16.msra.mxu0 %v758
    %861 = vmatprep.subr.bf16.mxu0 0
    %862 = vmatpush1.bf16.msra.mxu0 %v759
    %863 = vmatprep.subr.bf16.mxu0 0
    %864 = vmatpush1.bf16.msra.mxu0 %v760
    %865 = vmatprep.mubr.bf16.mxu0 %v194
    %866 = vmatmul.mubr.bf16.gmra.mrb[0].mxu0 %v536
    %v867 = vpop.f32.mrb[0].mxu0
    %v868 = vadd.f32 %v828, %v867
    %v869 = vpop.f32.mrb[0].mxu0
    %v870 = vpop.f32.mrb[0].mxu0
    %v871 = vpop.f32.mrb[0].mxu0
    %872 = vdwg.mxu0
    %v873 = vmax.f32 %v868, 0.0
    %874 = vst [vmem:[#allocation10] sm:$0xff] %v873
    // Predicated region
    $region34: #{tpu_custom_call.1} parent=1 // pred_check
      _
    $region35: #{tpu_custom_call.1} parent=1 // pred_check_branch
      %876 = sbr.rel (0) target = $region37
    $region36: #{tpu_custom_call.1} parent=1 // pred_region
      %s878 = ssub.s32 128, 128
      %879 = vsyncadd [#allocation4], %s878
      %s881 = sshll.u32 [#allocation10], 4
      %s882 = int_to_ptr.vmem [resolvable:$true] %s881
      %884 = dma.vmem_to_hbm [thread:$0]  %s882, 128, %s4, [#allocation4]
    $region37: #{tpu_custom_call.1} parent=1 // pred_fallthru
      _
    // Predicated region
    $region38: #{tpu_custom_call.1} parent=1 // pred_check
      _
    $region39: #{tpu_custom_call.1} parent=1 // pred_check_branch
      %886 = sbr.rel (0) target = $region41
    $region40: #{tpu_custom_call.1} parent=1 // pred_region
      %887 = dma.done [#allocation4], 128
    $region41: #{tpu_custom_call.1} parent=1 // pred_fallthru
      _
    %888 = vsyncpa [#allocation3], 1
    %889 = vsyncpa [#allocation6], 1
    %890 = vsyncpa [#allocation9], 1
    %891 = vsyncpa [#allocation4], 1

</llo_original>
